<compile_context>
chip_gen: v6e
topology: v6e:2x2x1
jax: 0.10.0
libtpu: 0.0.40
codegen_flags: <defaults>
</compile_context>

<pallas_src>
import functools

import jax
import jax.numpy as jnp
from jax.experimental import pallas as pl
from jax.experimental.pallas import tpu as pltpu


def _round_up(v, m):
    return ((v + m - 1) // m) * m


def _cdiv(a, b):
    return (a + b - 1) // b


# ----------------------------------------------------------------------------
# Kernel 1: prologue — xw1 = x @ W1t (bf16), xw2b = x @ W2t + b (f32)
# ----------------------------------------------------------------------------
def precompute_kernel(x_ref, w1t_ref, w2t_ref, b_ref, xw1_ref, xw2b_ref):
    x = x_ref[...]
    xw1 = jnp.dot(x, w1t_ref[...], preferred_element_type=jnp.float32)
    xw1_ref[...] = xw1.astype(xw1_ref.dtype)          # bf16: streamed matmul operand
    xw2b = jnp.dot(x, w2t_ref[...], preferred_element_type=jnp.float32) + b_ref[...]
    xw2b_ref[...] = xw2b                               # f32: epilogue operand


# ----------------------------------------------------------------------------
# Kernel 2: streamed  acc += B_tile(int8->bf16) @ xw1_tile
#           epilogue: out = relu(acc * (1/deg) + xw2b)
# ----------------------------------------------------------------------------
def sage_stream_kernel(b_ref, xw1_ref, xw2b_ref, invdeg_ref, o_ref, acc_ref):
    k = pl.program_id(1)

    @pl.when(k == 0)
    def _():
        acc_ref[...] = jnp.zeros_like(acc_ref)

    # int8 -> bf16 upcast on the VPU; free filler in this HBM-bound regime.
    b_tile = b_ref[...].astype(jnp.bfloat16)
    acc_ref[...] += jnp.dot(b_tile, xw1_ref[...],
                            preferred_element_type=jnp.float32)

    @pl.when(k == pl.num_programs(1) - 1)
    def _():
        out = acc_ref[...] * invdeg_ref[...] + xw2b_ref[...]
        o_ref[...] = jnp.maximum(out, 0.0).astype(o_ref.dtype)


# ----------------------------------------------------------------------------
# Tile planning / graph construction (done once, reused across forward calls)
# ----------------------------------------------------------------------------
def plan_tiles(num_nodes, tm=512, tk=1024, ensure_two_row_blocks=True):
    """Pick tile sizes and padded extents; rows and k padded independently."""
    tm_ = min(tm, _round_up(num_nodes, 128))
    if ensure_two_row_blocks and num_nodes > 128:
        # Keep >= 2 row blocks so the "parallel" axis shards across v7x's 2 TCs.
        tm_ = min(tm_, _round_up(_cdiv(num_nodes, 2), 128))
    tk_ = min(tk, _round_up(num_nodes, 128))
    np_rows = _round_up(num_nodes, tm_)
    np_cols = _round_up(num_nodes, tk_)
    return tm_, tk_, np_rows, np_cols


def build_adjacency_int8(edge_index, num_nodes, np_rows, np_cols):
    """Edge-count adjacency as pre-padded int8, plus per-row 1/deg in f32.

    B[i, j] = multiplicity of edge j->i (matches PyG scatter_mean with
    duplicate edges). Zero in-degree rows get inv_deg = 0 (empty mean -> 0).
    """
    src, dst = edge_index[0], edge_index[1]
    counts = jnp.zeros((num_nodes, num_nodes), jnp.int32).at[dst, src].add(1)
    deg = jnp.sum(counts, axis=1, keepdims=True).astype(jnp.float32)
    inv_deg = jnp.where(deg > 0.0, 1.0 / deg, 0.0)
    # TODO(synk): int8 caps per-edge multiplicity at 127 (fine for typical graphs).
    b_adj = jnp.pad(counts, ((0, np_rows - num_nodes),
                             (0, np_cols - num_nodes))).astype(jnp.int8)
    inv_deg = jnp.pad(inv_deg, ((0, np_rows - num_nodes), (0, 0)))
    return b_adj, inv_deg


# ----------------------------------------------------------------------------
# Forward wrapper
# ----------------------------------------------------------------------------
@functools.partial(jax.jit, static_argnames=("tm", "tk"))
def graphsage1_forward(x, b_adj, inv_deg, w1t, w2t, bias, *, tm, tk):
    """x: (N, F) f32; b_adj: (Np_rows, Np_cols) int8 pre-padded edge counts;
    inv_deg: (Np_rows, 1) f32; w1t/w2t: (F, C) f32 (transposed Linear weights);
    bias: (1, C) f32. tm/tk must divide Np_rows/Np_cols respectively."""
    N, F = x.shape
    C = w1t.shape[1]
    np_rows, np_cols = b_adj.shape
    assert np_rows % tm == 0 and np_cols % tk == 0, "tiles must divide padded adjacency"
    Cp = _round_up(C, 128)

    # Only small operands get padded here (O(N*F) / O(F*C)); the O(N^2)
    # adjacency arrives already padded and already int8 — no wrapper pass over it.
    Np = max(np_rows, np_cols)                     # multiple of 128 by construction
    x_p = jnp.pad(x, ((0, Np - N), (0, 0)))
    w1t_p = jnp.pad(w1t, ((0, 0), (0, Cp - C)))
    w2t_p = jnp.pad(w2t, ((0, 0), (0, Cp - C)))
    b_p = jnp.pad(bias, ((0, 0), (0, Cp - C)))

    # --- prologue: tiny dense projections -------------------------------------
    tp = 128
    xw1, xw2b = pl.pallas_call(
        precompute_kernel,
        out_shape=(
            jax.ShapeDtypeStruct((Np, Cp), jnp.bfloat16),
            jax.ShapeDtypeStruct((Np, Cp), jnp.float32),
        ),
        grid=(Np // tp,),
        in_specs=[
            pl.BlockSpec((tp, F), lambda i: (i, 0)),
            pl.BlockSpec((F, Cp), lambda i: (0, 0)),
            pl.BlockSpec((F, Cp), lambda i: (0, 0)),
            pl.BlockSpec((1, Cp), lambda i: (0, 0)),
        ],
        out_specs=(
            pl.BlockSpec((tp, Cp), lambda i: (i, 0)),
            pl.BlockSpec((tp, Cp), lambda i: (i, 0)),
        ),
        compiler_params=pltpu.CompilerParams(
            dimension_semantics=("parallel",)),
    )(x_p, w1t_p, w2t_p, b_p)

    # --- main streamed contraction: y = relu((B @ xw1) * invdeg + xw2b) -------
    y_p = pl.pallas_call(
        sage_stream_kernel,
        out_shape=jax.ShapeDtypeStruct((np_rows, Cp), jnp.float32),
        grid=(np_rows // tm, np_cols // tk),
        in_specs=[
            pl.BlockSpec((tm, tk), lambda i, k: (i, k)),    # B tile (int8 stream)
            pl.BlockSpec((tk, Cp), lambda i, k: (k, 0)),    # xw1 tile (bf16)
            pl.BlockSpec((tm, Cp), lambda i, k: (i, 0)),    # xw2b (row-block resident)
            pl.BlockSpec((tm, 1), lambda i, k: (i, 0)),     # 1/deg (row-block resident)
        ],
        out_specs=pl.BlockSpec((tm, Cp), lambda i, k: (i, 0)),
        scratch_shapes=[pltpu.VMEM((tm, Cp), jnp.float32)],
        compiler_params=pltpu.CompilerParams(
            dimension_semantics=("parallel", "arbitrary")),
    )(b_adj, xw1, xw2b, inv_deg)

    return y_p[:N, :C]


# ----------------------------------------------------------------------------
# Parameter init (mimics torch.nn.Linear.reset_parameters)
# ----------------------------------------------------------------------------
def init_params(key, nfeat, nclass):
    k1, k2, k3 = jax.random.split(key, 3)
    bound = 1.0 / jnp.sqrt(nfeat)
    # lin_l: Linear(nfeat, nclass, bias=True), stored transposed (nfeat, nclass)
    w1t = jax.random.uniform(k1, (nfeat, nclass), jnp.float32, -bound, bound)
    b1 = jax.random.uniform(k2, (1, nclass), jnp.float32, -bound, bound)
    # temp_weight: Linear(nfeat, nclass, bias=False)
    w2t = jax.random.uniform(k3, (nfeat, nclass), jnp.float32, -bound, bound)
    return w1t, w2t, b1


if __name__ == "__main__":
    key = jax.random.PRNGKey(0)
    N, nfeat, nclass, E = 256, 32, 16, 1024

    kx, ke, kp = jax.random.split(key, 3)
    x = jax.random.normal(kx, (N, nfeat), dtype=jnp.float32)
    edge_index = jax.random.randint(ke, (2, E), 0, N, dtype=jnp.int32)

    w1t, w2t, b1 = init_params(kp, nfeat, nclass)

    # Plan tiles once, build the adjacency already padded + int8 (reused across calls).
    tm_, tk_, np_rows, np_cols = plan_tiles(N)          # big defaults: tm=512, tk=1024
    b_adj, inv_deg = build_adjacency_int8(edge_index, N, np_rows, np_cols)

    y = graphsage1_forward(x, b_adj, inv_deg, w1t, w2t, b1, tm=tm_, tk=tk_)
    y = jax.block_until_ready(y)

    # Pure-JAX f32 reference (duplicate edges counted, like PyG scatter_mean).
    counts = jnp.zeros((N, N), jnp.float32).at[edge_index[1], edge_index[0]].add(1.0)
    deg = jnp.sum(counts, axis=1, keepdims=True)
    agg_ref = (counts @ x) / jnp.where(deg > 0, deg, 1.0)
    y_ref = jnp.maximum(agg_ref @ w1t + b1 + x @ w2t, 0.0)

    assert y.shape == y_ref.shape
    err = jnp.max(jnp.abs(y - y_ref))
    # xw1 streams in bf16 (loosened tolerance); adjacency counts and 1/deg are exact.
    assert jnp.allclose(y, y_ref, atol=3e-2, rtol=3e-2), f"max abs err = {err}"

    print("KERNEL_OK")
</pallas_src>

<mosaic_0001>
module attributes {stable_mosaic.version = 11 : i64} {
  func.func @precompute_kernel(%arg0: i32, %arg1: memref<128x32xf32, #tpu.memory_space<vmem>>, %arg2: memref<32x128xf32, #tpu.memory_space<vmem>>, %arg3: memref<32x128xf32, #tpu.memory_space<vmem>>, %arg4: memref<1x128xf32, #tpu.memory_space<vmem>>, %arg5: memref<128x128xbf16, #tpu.memory_space<vmem>>, %arg6: memref<128x128xf32, #tpu.memory_space<vmem>>) attributes {dimension_semantics = [#tpu.dimension_semantics<parallel>], iteration_bounds = array<i64: 2>, scalar_prefetch = 0 : i64, scratch_operands = 0 : i64, tpu.core_type = #tpu.core_type<tc>, window_params = [{transform_indices = @transform_0, window_bounds = array<i64: 128, 32>}, {pipeline_mode = #tpu.pipeline_mode<synchronous>, transform_indices = @transform_1, window_bounds = array<i64: 32, 128>}, {pipeline_mode = #tpu.pipeline_mode<synchronous>, transform_indices = @transform_2, window_bounds = array<i64: 32, 128>}, {pipeline_mode = #tpu.pipeline_mode<synchronous>, transform_indices = @transform_3, window_bounds = array<i64: 1, 128>}, {transform_indices = @transform_4, window_bounds = array<i64: 128, 128>}, {transform_indices = @transform_5, window_bounds = array<i64: 128, 128>}]} {
    %c0 = arith.constant 0 : index
    %c0_0 = arith.constant 0 : index
    %0 = vector.load %arg1[%c0, %c0_0] : memref<128x32xf32, #tpu.memory_space<vmem>>, vector<128x32xf32>
    %c0_1 = arith.constant 0 : index
    %c0_2 = arith.constant 0 : index
    %1 = vector.load %arg2[%c0_1, %c0_2] : memref<32x128xf32, #tpu.memory_space<vmem>>, vector<32x128xf32>
    %cst = arith.constant dense<0.000000e+00> : vector<128x128xf32>
    %2 = tpu.matmul %0, %1, %cst {dimension_numbers = #tpu.dot_dimension_numbers<[1], [0], [0], [1], [0, 0, 1, 1], [], []>} : vector<128x32xf32>, vector<32x128xf32>, vector<128x128xf32> -> vector<128x128xf32>
    %3 = arith.truncf %2 : vector<128x128xf32> to vector<128x128xbf16>
    %c0_3 = arith.constant 0 : index
    %c0_4 = arith.constant 0 : index
    %4 = vector.load %arg5[%c0_3, %c0_4] : memref<128x128xbf16, #tpu.memory_space<vmem>>, vector<128x128xbf16>
    tpu.vector_store %arg5[%c0_3, %c0_4], %3 {strides = array<i32>} : memref<128x128xbf16, #tpu.memory_space<vmem>>, vector<128x128xbf16>,
    %c0_5 = arith.constant 0 : index
    %c0_6 = arith.constant 0 : index
    %5 = vector.load %arg3[%c0_5, %c0_6] : memref<32x128xf32, #tpu.memory_space<vmem>>, vector<32x128xf32>
    %cst_7 = arith.constant dense<0.000000e+00> : vector<128x128xf32>
    %6 = tpu.matmul %0, %5, %cst_7 {dimension_numbers = #tpu.dot_dimension_numbers<[1], [0], [0], [1], [0, 0, 1, 1], [], []>} : vector<128x32xf32>, vector<32x128xf32>, vector<128x128xf32> -> vector<128x128xf32>
    %c0_8 = arith.constant 0 : index
    %c0_9 = arith.constant 0 : index
    %7 = vector.load %arg4[%c0_8, %c0_9] : memref<1x128xf32, #tpu.memory_space<vmem>>, vector<1x128xf32>
    %8 = vector.broadcast %7 : vector<1x128xf32> to vector<128x128xf32>
    %9 = arith.addf %6, %8 : vector<128x128xf32>
    %c0_10 = arith.constant 0 : index
    %c0_11 = arith.constant 0 : index
    %10 = vector.load %arg6[%c0_10, %c0_11] : memref<128x128xf32, #tpu.memory_space<vmem>>, vector<128x128xf32>
    tpu.vector_store %arg6[%c0_10, %c0_11], %9 {strides = array<i32>} : memref<128x128xf32, #tpu.memory_space<vmem>>, vector<128x128xf32>,
    return
  }
  func.func @transform_0(%arg0: i32) -> (i32, i32) {
    %c0_i32 = arith.constant 0 : i32
    %c0_i32_0 = arith.constant 0 : i32
    return %arg0, %c0_i32 : i32, i32
  }
  func.func @transform_1(%arg0: i32) -> (i32, i32) {
    %c0_i32 = arith.constant 0 : i32
    %c0_i32_0 = arith.constant 0 : i32
    %c0_i32_1 = arith.constant 0 : i32
    return %c0_i32, %c0_i32_0 : i32, i32
  }
  func.func @transform_2(%arg0: i32) -> (i32, i32) {
    %c0_i32 = arith.constant 0 : i32
    %c0_i32_0 = arith.constant 0 : i32
    %c0_i32_1 = arith.constant 0 : i32
    return %c0_i32, %c0_i32_0 : i32, i32
  }
  func.func @transform_3(%arg0: i32) -> (i32, i32) {
    %c0_i32 = arith.constant 0 : i32
    %c0_i32_0 = arith.constant 0 : i32
    %c0_i32_1 = arith.constant 0 : i32
    return %c0_i32, %c0_i32_0 : i32, i32
  }
  func.func @transform_4(%arg0: i32) -> (i32, i32) {
    %c0_i32 = arith.constant 0 : i32
    %c0_i32_0 = arith.constant 0 : i32
    return %arg0, %c0_i32 : i32, i32
  }
  func.func @transform_5(%arg0: i32) -> (i32, i32) {
    %c0_i32 = arith.constant 0 : i32
    %c0_i32_0 = arith.constant 0 : i32
    return %arg0, %c0_i32 : i32, i32
  }
}

module attributes {stable_mosaic.version = 11 : i64} {
  func.func @sage_stream_kernel(%arg0: i32, %arg1: i32, %arg2: memref<128x256xi8, #tpu.memory_space<vmem>>, %arg3: memref<256x128xbf16, #tpu.memory_space<vmem>>, %arg4: memref<128x128xf32, #tpu.memory_space<vmem>>, %arg5: memref<128x1xf32, #tpu.memory_space<vmem>>, %arg6: memref<128x128xf32, #tpu.memory_space<vmem>>, %arg7: memref<128x128xf32, #tpu.memory_space<vmem>>) attributes {dimension_semantics = [#tpu.dimension_semantics<parallel>, #tpu.dimension_semantics<arbitrary>], iteration_bounds = array<i64: 2, 1>, scalar_prefetch = 0 : i64, scratch_operands = 1 : i64, tpu.core_type = #tpu.core_type<tc>, window_params = [{transform_indices = @transform_0, window_bounds = array<i64: 128, 256>}, {transform_indices = @transform_1, window_bounds = array<i64: 256, 128>}, {transform_indices = @transform_2, window_bounds = array<i64: 128, 128>}, {transform_indices = @transform_3, window_bounds = array<i64: 128, 1>}, {transform_indices = @transform_4, window_bounds = array<i64: 128, 128>}]} {
    %c0_i32 = arith.constant 0 : i32
    %0 = arith.cmpi eq, %arg1, %c0_i32 : i32
    %1 = arith.extui %0 : i1 to i32
    %c0_i32_0 = arith.constant 0 : i32
    %2 = arith.cmpi ne, %1, %c0_i32_0 : i32
    scf.if %2 {
      %cst_10 = arith.constant 0.000000e+00 : f32
      %13 = vector.broadcast %cst_10 : f32 to vector<128x128xf32>
      %c0_11 = arith.constant 0 : index
      %c0_12 = arith.constant 0 : index
      %14 = vector.load %arg7[%c0_11, %c0_12] : memref<128x128xf32, #tpu.memory_space<vmem>>, vector<128x128xf32>
      tpu.vector_store %arg7[%c0_11, %c0_12], %13 {strides = array<i32>} : memref<128x128xf32, #tpu.memory_space<vmem>>, vector<128x128xf32>,
    } else {
    }
    %c0 = arith.constant 0 : index
    %c0_1 = arith.constant 0 : index
    %3 = vector.load %arg2[%c0, %c0_1] : memref<128x256xi8, #tpu.memory_space<vmem>>, vector<128x256xi8>
    %4 = arith.sitofp %3 : vector<128x256xi8> to vector<128x256xbf16>
    %c0_2 = arith.constant 0 : index
    %c0_3 = arith.constant 0 : index
    %5 = vector.load %arg7[%c0_2, %c0_3] : memref<128x128xf32, #tpu.memory_space<vmem>>, vector<128x128xf32>
    %c0_4 = arith.constant 0 : index
    %c0_5 = arith.constant 0 : index
    %6 = vector.load %arg3[%c0_4, %c0_5] : memref<256x128xbf16, #tpu.memory_space<vmem>>, vector<256x128xbf16>
    %cst = arith.constant dense<0.000000e+00> : vector<128x128xf32>
    %7 = tpu.matmul %4, %6, %cst {dimension_numbers = #tpu.dot_dimension_numbers<[1], [0], [0], [1], [0, 0, 1, 1], [], []>} : vector<128x256xbf16>, vector<256x128xbf16>, vector<128x128xf32> -> vector<128x128xf32>
    %8 = arith.addf %5, %7 : vector<128x128xf32>
    %c0_6 = arith.constant 0 : index
    %c0_7 = arith.constant 0 : index
    %9 = vector.load %arg7[%c0_6, %c0_7] : memref<128x128xf32, #tpu.memory_space<vmem>>, vector<128x128xf32>
    tpu.vector_store %arg7[%c0_6, %c0_7], %8 {strides = array<i32>} : memref<128x128xf32, #tpu.memory_space<vmem>>, vector<128x128xf32>,
    %c0_i32_8 = arith.constant 0 : i32
    %10 = arith.cmpi eq, %arg1, %c0_i32_8 : i32
    %11 = arith.extui %10 : i1 to i32
    %c0_i32_9 = arith.constant 0 : i32
    %12 = arith.cmpi ne, %11, %c0_i32_9 : i32
    scf.if %12 {
      %c0_10 = arith.constant 0 : index
      %c0_11 = arith.constant 0 : index
      %13 = vector.load %arg7[%c0_10, %c0_11] : memref<128x128xf32, #tpu.memory_space<vmem>>, vector<128x128xf32>
      %c0_12 = arith.constant 0 : index
      %c0_13 = arith.constant 0 : index
      %14 = vector.load %arg5[%c0_12, %c0_13] : memref<128x1xf32, #tpu.memory_space<vmem>>, vector<128x1xf32>
      %15 = vector.broadcast %14 : vector<128x1xf32> to vector<128x128xf32>
      %16 = arith.mulf %13, %15 : vector<128x128xf32>
      %c0_14 = arith.constant 0 : index
      %c0_15 = arith.constant 0 : index
      %17 = vector.load %arg4[%c0_14, %c0_15] : memref<128x128xf32, #tpu.memory_space<vmem>>, vector<128x128xf32>
      %18 = arith.addf %16, %17 : vector<128x128xf32>
      %cst_16 = arith.constant 0.000000e+00 : f32
      %19 = vector.broadcast %cst_16 : f32 to vector<128x128xf32>
      %20 = arith.maximumf %18, %19 : vector<128x128xf32>
      %c0_17 = arith.constant 0 : index
      %c0_18 = arith.constant 0 : index
      %21 = vector.load %arg6[%c0_17, %c0_18] : memref<128x128xf32, #tpu.memory_space<vmem>>, vector<128x128xf32>
      tpu.vector_store %arg6[%c0_17, %c0_18], %20 {strides = array<i32>} : memref<128x128xf32, #tpu.memory_space<vmem>>, vector<128x128xf32>,
    } else {
    }
    return
  }
  func.func @transform_0(%arg0: i32, %arg1: i32) -> (i32, i32) {
    %c0_i32 = arith.constant 0 : i32
    return %arg0, %arg1 : i32, i32
  }
  func.func @transform_1(%arg0: i32, %arg1: i32) -> (i32, i32) {
    %c0_i32 = arith.constant 0 : i32
    %c0_i32_0 = arith.constant 0 : i32
    return %arg1, %c0_i32 : i32, i32
  }
  func.func @transform_2(%arg0: i32, %arg1: i32) -> (i32, i32) {
    %c0_i32 = arith.constant 0 : i32
    %c0_i32_0 = arith.constant 0 : i32
    return %arg0, %c0_i32 : i32, i32
  }
  func.func @transform_3(%arg0: i32, %arg1: i32) -> (i32, i32) {
    %c0_i32 = arith.constant 0 : i32
    %c0_i32_0 = arith.constant 0 : i32
    return %arg0, %c0_i32 : i32, i32
  }
  func.func @transform_4(%arg0: i32, %arg1: i32) -> (i32, i32) {
    %c0_i32 = arith.constant 0 : i32
    %c0_i32_0 = arith.constant 0 : i32
    return %arg0, %c0_i32 : i32, i32
  }
}

</mosaic_0001>

<llo_original>
// kernel: graphsage1_forward.2
$region0: #{graphsage1_forward.2}
  #allocation0 [shape = 'u32[]', space=smem, size = 0x4, offset = 0x4, fixed_abs, tag = 'smem constant byte address 0x4 - core index']
  #allocation1 [shape = 'u32[144,128]{1,0:T(1,128)}', space=vmem, size = 0x12000, scoped, tag = 'internal scratch']
  %s0 = inlined_call_operand.vmem [shape: f32[256,32], index: 0, kind: input, shape index: {}]
  %s1 = inlined_call_operand.vmem [shape: f32[32,128], index: 1, kind: input, shape index: {}]
  %s2 = inlined_call_operand.vmem [shape: f32[32,128], index: 2, kind: input, shape index: {}]
  %s3 = inlined_call_operand.vmem [shape: f32[1,128], index: 3, kind: input, shape index: {}]
  %s4 = inlined_call_operand.vmem [shape: bf16[256,128], index: 4, kind: output, shape index: {0}]
  %s5 = inlined_call_operand.vmem [shape: f32[256,128], index: 5, kind: output, shape index: {1}]
  %6 = xla_tuple %s4, %s5
  %s7 = sld [smem:[#allocation0]]
  $region57: #{graphsage1_forward.2} parent=0
    _
  %s9 = ssub.s32 1, %s7
  %s10 = scalar_select 0, %s9, %s7
  loop: start=0, step=1, limit=4
  $region2: #{graphsage1_forward.2} parent=0 // loop_pre_header
    _
  $region3: #{graphsage1_forward.2} parent=0 // loop_header
    %s12 = sphi 0, %s16
    %p13 = scmp.ge.s32.totalorder %s12, 4
    %s22 = sphi 0, %s24
    %s25 = sphi 0, %s22
    %s26 = sphi 0, %s25
    %s42 = sphi 0, %s26
    %s46 = sphi 0, %s46
    %s48 = sphi 0, %s46
    %s49 = sphi 0, %s48
    %s63 = sphi 0, %s49
    %s67 = sphi 0, %s67
    %s69 = sphi 0, %s67
    %s70 = sphi 0, %s69
    %s84 = sphi 0, %s70
    %s88 = sphi 0, %s88
    %s90 = sphi 0, %s88
    %s91 = sphi 0, %s90
    %s105 = sphi 0, %s91
    %s111 = sphi 0, %s113
    %s114 = sphi 0, %s111
    %s115 = sphi 0, %s114
    %s131 = sphi 0, %s115
    %s137 = sphi 0, %s139
    %s140 = sphi 0, %s137
    %s141 = sphi 0, %s140
    %s157 = sphi 0, %s141
  $region4: #{graphsage1_forward.2} parent=0 // loop_header_branch
    %15 = sbr.rel (%p13) target = $region8
  $region5: #{graphsage1_forward.2} parent=0 // loop_body
    %s17 = ssub.s32 %s12, 1
    %s18 = ssub.s32 %s12, 2
    %s19 = sadd.s32 %s12, 1
    %s20 = ssub.s32 %s12, %s19
    %p21 = scmp.eq.s32.totalorder %s20, 0
    %s23 = sadd.s32 %s22, 1
    %s24 = scalar_select %p21, %s22, %s23
    %p27 = pneg %p21
    %p28 = scmp.eq.s32.totalorder %s12, 1
    %p29 = por %p27, %p28
    %p30 = scmp.ne.s32.totalorder %s22, %s25
    %p31 = scmp.eq.s32.totalorder %s12, 0
    %p32 = por %p30, %p31
    %p33 = scmp.ne.s32.totalorder %s22, %s25
    %p34 = scmp.eq.s32.totalorder %s17, 1
    %p35 = por %p33, %p34
    %p36 = scmp.ne.s32.totalorder %s25, %s26
    %p37 = scmp.eq.s32.totalorder %s17, 0
    %p38 = por %p36, %p37
    %p39 = scmp.ne.s32.totalorder %s25, %s26
    %p40 = scmp.eq.s32.totalorder %s18, 1
    %p41 = por %p39, %p40
    %p43 = scmp.ne.s32.totalorder %s26, %s42
    %p44 = scmp.eq.s32.totalorder %s18, 0
    %p45 = por %p43, %p44
    %s47 = sadd.s32 %s46, 1
    %p50 = scmp.eq.s32.totalorder %s12, 1
    %p51 = scmp.ne.s32.totalorder %s46, %s48
    %p52 = scmp.eq.s32.totalorder %s12, 0
    %p53 = por %p51, %p52
    %p54 = scmp.ne.s32.totalorder %s46, %s48
    %p55 = scmp.eq.s32.totalorder %s17, 1
    %p56 = por %p54, %p55
    %p57 = scmp.ne.s32.totalorder %s48, %s49
    %p58 = scmp.eq.s32.totalorder %s17, 0
    %p59 = por %p57, %p58
    %p60 = scmp.ne.s32.totalorder %s48, %s49
    %p61 = scmp.eq.s32.totalorder %s18, 1
    %p62 = por %p60, %p61
    %p64 = scmp.ne.s32.totalorder %s49, %s63
    %p65 = scmp.eq.s32.totalorder %s18, 0
    %p66 = por %p64, %p65
    %s68 = sadd.s32 %s67, 1
    %p71 = scmp.eq.s32.totalorder %s12, 1
    %p72 = scmp.ne.s32.totalorder %s67, %s69
    %p73 = scmp.eq.s32.totalorder %s12, 0
    %p74 = por %p72, %p73
    %p75 = scmp.ne.s32.totalorder %s67, %s69
    %p76 = scmp.eq.s32.totalorder %s17, 1
    %p77 = por %p75, %p76
    %p78 = scmp.ne.s32.totalorder %s69, %s70
    %p79 = scmp.eq.s32.totalorder %s17, 0
    %p80 = por %p78, %p79
    %p81 = scmp.ne.s32.totalorder %s69, %s70
    %p82 = scmp.eq.s32.totalorder %s18, 1
    %p83 = por %p81, %p82
    %p85 = scmp.ne.s32.totalorder %s70, %s84
    %p86 = scmp.eq.s32.totalorder %s18, 0
    %p87 = por %p85, %p86
    %s89 = sadd.s32 %s88, 1
    %p92 = scmp.eq.s32.totalorder %s12, 1
    %p93 = scmp.ne.s32.totalorder %s88, %s90
    %p94 = scmp.eq.s32.totalorder %s12, 0
    %p95 = por %p93, %p94
    %p96 = scmp.ne.s32.totalorder %s88, %s90
    %p97 = scmp.eq.s32.totalorder %s17, 1
    %p98 = por %p96, %p97
    %p99 = scmp.ne.s32.totalorder %s90, %s91
    %p100 = scmp.eq.s32.totalorder %s17, 0
    %p101 = por %p99, %p100
    %p102 = scmp.ne.s32.totalorder %s90, %s91
    %p103 = scmp.eq.s32.totalorder %s18, 1
    %p104 = por %p102, %p103
    %p106 = scmp.ne.s32.totalorder %s91, %s105
    %p107 = scmp.eq.s32.totalorder %s18, 0
    %p108 = por %p106, %p107
    %s109 = ssub.s32 %s12, %s19
    %p110 = scmp.eq.s32.totalorder %s109, 0
    %s112 = sadd.s32 %s111, 1
    %s113 = scalar_select %p110, %s111, %s112
    %p116 = pneg %p110
    %p117 = scmp.eq.s32.totalorder %s12, 1
    %p118 = por %p116, %p117
    %p119 = scmp.ne.s32.totalorder %s111, %s114
    %p120 = scmp.eq.s32.totalorder %s12, 0
    %p121 = por %p119, %p120
    %p122 = scmp.ne.s32.totalorder %s111, %s114
    %p123 = scmp.eq.s32.totalorder %s17, 1
    %p124 = por %p122, %p123
    %p125 = scmp.ne.s32.totalorder %s114, %s115
    %p126 = scmp.eq.s32.totalorder %s17, 0
    %p127 = por %p125, %p126
    %p128 = scmp.ne.s32.totalorder %s114, %s115
    %p129 = scmp.eq.s32.totalorder %s18, 1
    %p130 = por %p128, %p129
    %p132 = scmp.ne.s32.totalorder %s115, %s131
    %p133 = scmp.eq.s32.totalorder %s18, 0
    %p134 = por %p132, %p133
    %s135 = ssub.s32 %s12, %s19
    %p136 = scmp.eq.s32.totalorder %s135, 0
    %s138 = sadd.s32 %s137, 1
    %s139 = scalar_select %p136, %s137, %s138
    %p142 = pneg %p136
    %p143 = scmp.eq.s32.totalorder %s12, 1
    %p144 = por %p142, %p143
    %p145 = scmp.ne.s32.totalorder %s137, %s140
    %p146 = scmp.eq.s32.totalorder %s12, 0
    %p147 = por %p145, %p146
    %p148 = scmp.ne.s32.totalorder %s137, %s140
    %p149 = scmp.eq.s32.totalorder %s17, 1
    %p150 = por %p148, %p149
    %p151 = scmp.ne.s32.totalorder %s140, %s141
    %p152 = scmp.eq.s32.totalorder %s17, 0
    %p153 = por %p151, %p152
    %p154 = scmp.ne.s32.totalorder %s140, %s141
    %p155 = scmp.eq.s32.totalorder %s18, 1
    %p156 = por %p154, %p155
    %p158 = scmp.ne.s32.totalorder %s141, %s157
    %p159 = scmp.eq.s32.totalorder %s18, 0
    %p160 = por %p158, %p159
    %p161 = scmp.le.s32.totalorder 1, %s12
    %p162 = scmp.lt.s32.totalorder %s12, 3
    %p163 = pnand %p161, %p162
    %p164 = pneg %p163
    // Predicated region
    $region9: #{graphsage1_forward.2} parent=5 // pred_check
      _
    $region10: #{graphsage1_forward.2} parent=5 // pred_check_branch
      %166 = sbr.rel (%p163) target = $region12
    $region11: #{graphsage1_forward.2} parent=5 // pred_region
      %s167 = ssub.s32 %s12, 1
      // Predicated region
      $region13: #{graphsage1_forward.2} parent=11 // pred_check
        %p168 = pneg %p59
      $region14: #{graphsage1_forward.2} parent=11 // pred_check_branch
        %170 = sbr.rel (%p168) target = $region16
      $region15: #{graphsage1_forward.2} parent=11 // pred_region
        _
      $region16: #{graphsage1_forward.2} parent=11 // pred_fallthru
        _
      // Predicated region
      $region17: #{graphsage1_forward.2} parent=11 // pred_check
        %p171 = pneg %p80
      $region18: #{graphsage1_forward.2} parent=11 // pred_check_branch
        %173 = sbr.rel (%p171) target = $region20
      $region19: #{graphsage1_forward.2} parent=11 // pred_region
        _
      $region20: #{graphsage1_forward.2} parent=11 // pred_fallthru
        _
      // Predicated region
      $region21: #{graphsage1_forward.2} parent=11 // pred_check
        %p174 = pneg %p101
      $region22: #{graphsage1_forward.2} parent=11 // pred_check_branch
        %176 = sbr.rel (%p174) target = $region24
      $region23: #{graphsage1_forward.2} parent=11 // pred_region
        _
      $region24: #{graphsage1_forward.2} parent=11 // pred_fallthru
        _
    $region12: #{graphsage1_forward.2} parent=5 // pred_fallthru
      _
    %p177 = scmp.lt.s32.totalorder %s12, 2
    // Predicated region
    $region25: #{graphsage1_forward.2} parent=5 // pred_check
      %p178 = pneg %p177
    $region26: #{graphsage1_forward.2} parent=5 // pred_check_branch
      %180 = sbr.rel (%p178) target = $region28
    $region27: #{graphsage1_forward.2} parent=5 // pred_region
      // Predicated region
      $region29: #{graphsage1_forward.2} parent=27 // pred_check
        %p181 = pneg %p32
      $region30: #{graphsage1_forward.2} parent=27 // pred_check_branch
        %183 = sbr.rel (%p181) target = $region32
      $region31: #{graphsage1_forward.2} parent=27 // pred_region
        %s184 = smul.u32 16, %s12
        %p185 = scmp.lt.s32.totalorder %s184, 31
        %s186 = scalar_select %p185, %s184, 31
        %s187 = smul.addr %s186, 8
        %s188 = scalar_lea.vmem %s0, %s187
        %s189 = smul.u32 16, %s12
      $region32: #{graphsage1_forward.2} parent=27 // pred_fallthru
        _
    $region28: #{graphsage1_forward.2} parent=5 // pred_fallthru
      _
    %p190 = scmp.le.s32.totalorder 1, %s12
    %p191 = scmp.lt.s32.totalorder %s12, 3
    %p192 = pnand %p190, %p191
    %p193 = pneg %p192
    // Predicated region
    $region33: #{graphsage1_forward.2} parent=5 // pred_check
      _
    $region34: #{graphsage1_forward.2} parent=5 // pred_check_branch
      %195 = sbr.rel (%p192) target = $region36
    $region35: #{graphsage1_forward.2} parent=5 // pred_region
      %s196 = ssub.s32 %s12, 1
      %s197 = smul.u32 16, %s17
      %p198 = scmp.lt.s32.totalorder %s197, 31
      %s199 = scalar_select %p198, %s197, 31
      %s200 = smul.addr %s199, 8
      %s201 = scalar_lea.vmem %s0, %s200
      %p202 = pneg %p38
      %p203 = pneg %p35
      %p204 = pneg %p59
      %p205 = pneg %p56
      %p206 = pneg %p80
      %p207 = pneg %p77
      %p208 = pneg %p101
      %p209 = pneg %p98
      %p210 = pneg %p127
      %p211 = pneg %p124
      %s212 = smul.u32 16, %s17
      %p213 = scmp.lt.s32.totalorder %s212, 31
      %s214 = scalar_select %p213, %s212, 31
      %s215 = smul.addr %s214, 4
      %s216 = scalar_lea.vmem %s4, %s215
      %p217 = pneg %p153
      %p218 = pneg %p150
      %s219 = smul.u32 16, %s17
      %p220 = scmp.lt.s32.totalorder %s219, 31
      %s221 = scalar_select %p220, %s219, 31
      %s222 = smul.addr %s221, 8
      %s223 = scalar_lea.vmem %s5, %s222
      %s224 = smul.u32 16, %s17
      %p225 = scmp.lt.s32.totalorder %s224, 31
      %s226 = scalar_select %p225, %s224, 31
      %s227 = smul.addr %s226, 8
      %s228 = scalar_lea.vmem %s0, %s227
      %s229 = smul.u32 16, %s17
      %s230 = smul.u32 16, %s17
      %p231 = scmp.lt.s32.totalorder %s230, 31
      %s232 = scalar_select %p231, %s230, 31
      %s233 = smul.addr %s232, 4
      %s234 = scalar_lea.vmem %s4, %s233
      %s235 = smul.u32 16, %s17
      %s236 = smul.u32 16, %s17
      %p237 = scmp.lt.s32.totalorder %s236, 31
      %s238 = scalar_select %p237, %s236, 31
      %s239 = smul.addr %s238, 8
      %s240 = scalar_lea.vmem %s5, %s239
      %s241 = smul.u32 16, %s17
      %v242 = vld [vmem:[%s228] sm:$0xff]
      %v243 = vld [vmem:[%s228 + $0x8] sm:$0xff]
      %v244 = vld [vmem:[%s228 + $0x10] sm:$0xff]
      %v245 = vld [vmem:[%s228 + $0x18] sm:$0xff]
      %v246 = vld [vmem:[%s228 + $0x20] sm:$0xff]
      %v247 = vld [vmem:[%s228 + $0x28] sm:$0xff]
      %v248 = vld [vmem:[%s228 + $0x30] sm:$0xff]
      %v249 = vld [vmem:[%s228 + $0x38] sm:$0xff]
      %v250 = vld [vmem:[%s228 + $0x40] sm:$0xff]
      %v251 = vld [vmem:[%s228 + $0x48] sm:$0xff]
      %v252 = vld [vmem:[%s228 + $0x50] sm:$0xff]
      %v253 = vld [vmem:[%s228 + $0x58] sm:$0xff]
      %v254 = vld [vmem:[%s228 + $0x60] sm:$0xff]
      %v255 = vld [vmem:[%s228 + $0x68] sm:$0xff]
      %v256 = vld [vmem:[%s228 + $0x70] sm:$0xff]
      %v257 = vld [vmem:[%s228 + $0x78] sm:$0xff]
      %v258 = vld [vmem:[%s1] sm:$0xff]
      %v259 = vld [vmem:[%s1 + $0x8] sm:$0xff]
      %v260 = vld [vmem:[%s1 + $0x10] sm:$0xff]
      %v261 = vld [vmem:[%s1 + $0x18] sm:$0xff]
      %vm262 = vcmask 261120
      %v264 = vsel %vm262, %v242, 0
      %v267 = vsel %vm262, %v243, 0
      %v270 = vsel %vm262, %v244, 0
      %v273 = vsel %vm262, %v245, 0
      %v276 = vsel %vm262, %v246, 0
      %v279 = vsel %vm262, %v247, 0
      %v282 = vsel %vm262, %v248, 0
      %v285 = vsel %vm262, %v249, 0
      %v288 = vsel %vm262, %v250, 0
      %v291 = vsel %vm262, %v251, 0
      %v294 = vsel %vm262, %v252, 0
      %v297 = vsel %vm262, %v253, 0
      %v300 = vsel %vm262, %v254, 0
      %v303 = vsel %vm262, %v255, 0
      %v306 = vsel %vm262, %v256, 0
      %v309 = vsel %vm262, %v257, 0
      %311 = vmatprep.subr.mxu0 0.0
      %312 = vmatpush1.msra.mxu0 0.0
      %313 = vmatprep.subr.mxu0 0.0
      %314 = vmatpush1.msra.mxu0 0.0
      %315 = vmatprep.subr.mxu0 0.0
      %316 = vmatpush1.msra.mxu0 0.0
      %317 = vmatprep.subr.mxu0 0.0
      %318 = vmatpush1.msra.mxu0 0.0
      %319 = vmatprep.subr.mxu0 0.0
      %320 = vmatpush1.msra.mxu0 0.0
      %321 = vmatprep.subr.mxu0 0.0
      %322 = vmatpush1.msra.mxu0 0.0
      %323 = vmatprep.subr.mxu0 0.0
      %324 = vmatpush1.msra.mxu0 0.0
      %325 = vmatprep.subr.mxu0 0.0
      %326 = vmatpush1.msra.mxu0 0.0
      %327 = vmatprep.subr.mxu0 0.0
      %328 = vmatpush1.msra.mxu0 0.0
      %329 = vmatprep.subr.mxu0 0.0
      %330 = vmatpush1.msra.mxu0 0.0
      %331 = vmatprep.subr.mxu0 0.0
      %332 = vmatpush1.msra.mxu0 0.0
      %333 = vmatprep.subr.mxu0 0.0
      %334 = vmatpush1.msra.mxu0 0.0
      %335 = vmatprep.subr.mxu0 0.0
      %336 = vmatpush1.msra.mxu0 %v261
      %337 = vmatprep.subr.mxu0 0.0
      %338 = vmatpush1.msra.mxu0 %v260
      %339 = vmatprep.subr.mxu0 0.0
      %340 = vmatpush1.msra.mxu0 %v259
      %341 = vmatprep.subr.mxu0 0.0
      %342 = vmatpush1.msra.mxu0 %v258
      %343 = vmatprep.subr.mxu0 0.0
      %344 = vmatpush2.msra.mxu0 0.0
      %345 = vmatprep.subr.mxu0 0.0
      %346 = vmatpush2.msra.mxu0 0.0
      %347 = vmatprep.subr.mxu0 0.0
      %348 = vmatpush2.msra.mxu0 0.0
      %349 = vmatprep.subr.mxu0 0.0
      %350 = vmatpush2.msra.mxu0 0.0
      %351 = vmatprep.subr.mxu0 0.0
      %352 = vmatpush2.msra.mxu0 0.0
      %353 = vmatprep.subr.mxu0 0.0
      %354 = vmatpush2.msra.mxu0 0.0
      %355 = vmatprep.subr.mxu0 0.0
      %356 = vmatpush2.msra.mxu0 0.0
      %357 = vmatprep.subr.mxu0 0.0
      %358 = vmatpush2.msra.mxu0 0.0
      %359 = vmatprep.subr.mxu0 0.0
      %360 = vmatpush2.msra.mxu0 0.0
      %361 = vmatprep.subr.mxu0 0.0
      %362 = vmatpush2.msra.mxu0 0.0
      %363 = vmatprep.subr.mxu0 0.0
      %364 = vmatpush2.msra.mxu0 0.0
      %365 = vmatprep.subr.mxu0 0.0
      %366 = vmatpush2.msra.mxu0 0.0
      %367 = vmatprep.subr.mxu0 0.0
      %368 = vmatpush2.msra.mxu0 0.0
      %369 = vmatprep.subr.mxu0 0.0
      %370 = vmatpush2.msra.mxu0 0.0
      %371 = vmatprep.subr.mxu0 0.0
      %372 = vmatpush2.msra.mxu0 0.0
      %373 = vmatprep.subr.mxu0 0.0
      %374 = vmatpush2.msra.mxu0 0.0
      %375 = vmatprep.mubr.f32.mxu0 0.0
      %376 = vmatmul.mubr.f32.gmra.mxu0 %v264
      %v377 = vpop.f32.mrf.mxu0
      %v378 = vadd.f32 0.0, %v377
      %v379 = vpop.f32.mrf.mxu0
      %380 = vmatprep.mubr.f32.mxu0 0.0
      %381 = vmatmul.mubr.f32.gmra.mxu0 %v267
      %v382 = vpop.f32.mrf.mxu0
      %v383 = vadd.f32 0.0, %v382
      %v384 = vpop.f32.mrf.mxu0
      %385 = vmatprep.mubr.f32.mxu0 0.0
      %386 = vmatmul.mubr.f32.gmra.mxu0 %v270
      %v387 = vpop.f32.mrf.mxu0
      %v388 = vadd.f32 0.0, %v387
      %v389 = vpop.f32.mrf.mxu0
      %390 = vmatprep.mubr.f32.mxu0 0.0
      %391 = vmatmul.mubr.f32.gmra.mxu0 %v273
      %v392 = vpop.f32.mrf.mxu0
      %v393 = vadd.f32 0.0, %v392
      %v394 = vpop.f32.mrf.mxu0
      %395 = vmatprep.mubr.f32.mxu0 0.0
      %396 = vmatmul.mubr.f32.gmra.mxu0 %v276
      %v397 = vpop.f32.mrf.mxu0
      %v398 = vadd.f32 0.0, %v397
      %v399 = vpop.f32.mrf.mxu0
      %400 = vmatprep.mubr.f32.mxu0 0.0
      %401 = vmatmul.mubr.f32.gmra.mxu0 %v279
      %v402 = vpop.f32.mrf.mxu0
      %v403 = vadd.f32 0.0, %v402
      %v404 = vpop.f32.mrf.mxu0
      %405 = vmatprep.mubr.f32.mxu0 0.0
      %406 = vmatmul.mubr.f32.gmra.mxu0 %v282
      %v407 = vpop.f32.mrf.mxu0
      %v408 = vadd.f32 0.0, %v407
      %v409 = vpop.f32.mrf.mxu0
      %410 = vmatprep.mubr.f32.mxu0 0.0
      %411 = vmatmul.mubr.f32.gmra.mxu0 %v285
      %v412 = vpop.f32.mrf.mxu0
      %v413 = vadd.f32 0.0, %v412
      %v414 = vpop.f32.mrf.mxu0
      %415 = vmatprep.mubr.f32.mxu0 0.0
      %416 = vmatmul.mubr.f32.gmra.mxu0 %v288
      %v417 = vpop.f32.mrf.mxu0
      %v418 = vadd.f32 0.0, %v417
      %v419 = vpop.f32.mrf.mxu0
      %420 = vmatprep.mubr.f32.mxu0 0.0
      %421 = vmatmul.mubr.f32.gmra.mxu0 %v291
      %v422 = vpop.f32.mrf.mxu0
      %v423 = vadd.f32 0.0, %v422
      %v424 = vpop.f32.mrf.mxu0
      %425 = vmatprep.mubr.f32.mxu0 0.0
      %426 = vmatmul.mubr.f32.gmra.mxu0 %v294
      %v427 = vpop.f32.mrf.mxu0
      %v428 = vadd.f32 0.0, %v427
      %v429 = vpop.f32.mrf.mxu0
      %430 = vmatprep.mubr.f32.mxu0 0.0
      %431 = vmatmul.mubr.f32.gmra.mxu0 %v297
      %v432 = vpop.f32.mrf.mxu0
      %v433 = vadd.f32 0.0, %v432
      %v434 = vpop.f32.mrf.mxu0
      %435 = vmatprep.mubr.f32.mxu0 0.0
      %436 = vmatmul.mubr.f32.gmra.mxu0 %v300
      %v437 = vpop.f32.mrf.mxu0
      %v438 = vadd.f32 0.0, %v437
      %v439 = vpop.f32.mrf.mxu0
      %440 = vmatprep.mubr.f32.mxu0 0.0
      %441 = vmatmul.mubr.f32.gmra.mxu0 %v303
      %v442 = vpop.f32.mrf.mxu0
      %v443 = vadd.f32 0.0, %v442
      %v444 = vpop.f32.mrf.mxu0
      %445 = vmatprep.mubr.f32.mxu0 0.0
      %446 = vmatmul.mubr.f32.gmra.mxu0 %v306
      %v447 = vpop.f32.mrf.mxu0
      %v448 = vadd.f32 0.0, %v447
      %v449 = vpop.f32.mrf.mxu0
      %450 = vmatprep.mubr.f32.mxu0 0.0
      %451 = vmatmul.mubr.f32.gmra.mxu0 %v309
      %v452 = vpop.f32.mrf.mxu0
      %v453 = vadd.f32 0.0, %v452
      %v454 = vpop.f32.mrf.mxu0
      %455 = vdwg.mxu0
      %v456 = vpack.c.bf16 %v383, %v378
      %v457 = vpack.c.bf16 %v393, %v388
      %v458 = vpack.c.bf16 %v403, %v398
      %v459 = vpack.c.bf16 %v413, %v408
      %v460 = vpack.c.bf16 %v423, %v418
      %v461 = vpack.c.bf16 %v433, %v428
      %v462 = vpack.c.bf16 %v443, %v438
      %v463 = vpack.c.bf16 %v453, %v448
      %v472 = vunpack.c.l.b16 %v456
      %v473 = vunpack.c.h.b16 %v456
      %v474 = vunpack.c.l.b16 %v457
      %v475 = vunpack.c.h.b16 %v457
      %v476 = vunpack.c.l.b16 %v458
      %v477 = vunpack.c.h.b16 %v458
      %v478 = vunpack.c.l.b16 %v459
      %v479 = vunpack.c.h.b16 %v459
      %v480 = vunpack.c.l.b16 %v460
      %v481 = vunpack.c.h.b16 %v460
      %v482 = vunpack.c.l.b16 %v461
      %v483 = vunpack.c.h.b16 %v461
      %v484 = vunpack.c.l.b16 %v462
      %v485 = vunpack.c.h.b16 %v462
      %v486 = vunpack.c.l.b16 %v463
      %v487 = vunpack.c.h.b16 %v463
      %v488 = vpack.c.b16 %v472, %v472
      %v489 = vpack.c.b16 %v473, %v473
      %v490 = vpack.c.b16 %v474, %v474
      %v491 = vpack.c.b16 %v475, %v475
      %v492 = vpack.c.b16 %v476, %v476
      %v493 = vpack.c.b16 %v477, %v477
      %v494 = vpack.c.b16 %v478, %v478
      %v495 = vpack.c.b16 %v479, %v479
      %v496 = vpack.c.b16 %v480, %v480
      %v497 = vpack.c.b16 %v481, %v481
      %v498 = vpack.c.b16 %v482, %v482
      %v499 = vpack.c.b16 %v483, %v483
      %v500 = vpack.c.b16 %v484, %v484
      %v501 = vpack.c.b16 %v485, %v485
      %v502 = vpack.c.b16 %v486, %v486
      %v503 = vpack.c.b16 %v487, %v487
      %520 = vst [vmem:[%s234] sm:$0xf] %v488
      %521 = vst [vmem:[%s234 + $0x4] sm:$0xf] %v489
      %522 = vst [vmem:[%s234 + $0x8] sm:$0xf] %v490
      %523 = vst [vmem:[%s234 + $0xc] sm:$0xf] %v491
      %524 = vst [vmem:[%s234 + $0x10] sm:$0xf] %v492
      %525 = vst [vmem:[%s234 + $0x14] sm:$0xf] %v493
      %526 = vst [vmem:[%s234 + $0x18] sm:$0xf] %v494
      %527 = vst [vmem:[%s234 + $0x1c] sm:$0xf] %v495
      %528 = vst [vmem:[%s234 + $0x20] sm:$0xf] %v496
      %529 = vst [vmem:[%s234 + $0x24] sm:$0xf] %v497
      %530 = vst [vmem:[%s234 + $0x28] sm:$0xf] %v498
      %531 = vst [vmem:[%s234 + $0x2c] sm:$0xf] %v499
      %532 = vst [vmem:[%s234 + $0x30] sm:$0xf] %v500
      %533 = vst [vmem:[%s234 + $0x34] sm:$0xf] %v501
      %534 = vst [vmem:[%s234 + $0x38] sm:$0xf] %v502
      %535 = vst [vmem:[%s234 + $0x3c] sm:$0xf] %v503
      %v536 = vld [vmem:[%s2] sm:$0xff]
      %v537 = vld [vmem:[%s2 + $0x8] sm:$0xff]
      %v538 = vld [vmem:[%s2 + $0x10] sm:$0xff]
      %v539 = vld [vmem:[%s2 + $0x18] sm:$0xff]
      %v540 = vld [vmem:[%s3] sm:$0x1]
      %v542 = vlaneseq
      %v543 = vshrl.u32 %v542, 7
      %v544 = vsub.s32 0, %v543
      %v545 = vrot.slane %v540, %v544
      %547 = vmatprep.subr.mxu0 0.0
      %548 = vmatpush1.msra.mxu0 0.0
      %549 = vmatprep.subr.mxu0 0.0
      %550 = vmatpush1.msra.mxu0 0.0
      %551 = vmatprep.subr.mxu0 0.0
      %552 = vmatpush1.msra.mxu0 0.0
      %553 = vmatprep.subr.mxu0 0.0
      %554 = vmatpush1.msra.mxu0 0.0
      %555 = vmatprep.subr.mxu0 0.0
      %556 = vmatpush1.msra.mxu0 0.0
      %557 = vmatprep.subr.mxu0 0.0
      %558 = vmatpush1.msra.mxu0 0.0
      %559 = vmatprep.subr.mxu0 0.0
      %560 = vmatpush1.msra.mxu0 0.0
      %561 = vmatprep.subr.mxu0 0.0
      %562 = vmatpush1.msra.mxu0 0.0
      %563 = vmatprep.subr.mxu0 0.0
      %564 = vmatpush1.msra.mxu0 0.0
      %565 = vmatprep.subr.mxu0 0.0
      %566 = vmatpush1.msra.mxu0 0.0
      %567 = vmatprep.subr.mxu0 0.0
      %568 = vmatpush1.msra.mxu0 0.0
      %569 = vmatprep.subr.mxu0 0.0
      %570 = vmatpush1.msra.mxu0 0.0
      %571 = vmatprep.subr.mxu0 0.0
      %572 = vmatpush1.msra.mxu0 %v539
      %573 = vmatprep.subr.mxu0 0.0
      %574 = vmatpush1.msra.mxu0 %v538
      %575 = vmatprep.subr.mxu0 0.0
      %576 = vmatpush1.msra.mxu0 %v537
      %577 = vmatprep.subr.mxu0 0.0
      %578 = vmatpush1.msra.mxu0 %v536
      %579 = vmatprep.subr.mxu0 0.0
      %580 = vmatpush2.msra.mxu0 0.0
      %581 = vmatprep.subr.mxu0 0.0
      %582 = vmatpush2.msra.mxu0 0.0
      %583 = vmatprep.subr.mxu0 0.0
      %584 = vmatpush2.msra.mxu0 0.0
      %585 = vmatprep.subr.mxu0 0.0
      %586 = vmatpush2.msra.mxu0 0.0
      %587 = vmatprep.subr.mxu0 0.0
      %588 = vmatpush2.msra.mxu0 0.0
      %589 = vmatprep.subr.mxu0 0.0
      %590 = vmatpush2.msra.mxu0 0.0
      %591 = vmatprep.subr.mxu0 0.0
      %592 = vmatpush2.msra.mxu0 0.0
      %593 = vmatprep.subr.mxu0 0.0
      %594 = vmatpush2.msra.mxu0 0.0
      %595 = vmatprep.subr.mxu0 0.0
      %596 = vmatpush2.msra.mxu0 0.0
      %597 = vmatprep.subr.mxu0 0.0
      %598 = vmatpush2.msra.mxu0 0.0
      %599 = vmatprep.subr.mxu0 0.0
      %600 = vmatpush2.msra.mxu0 0.0
      %601 = vmatprep.subr.mxu0 0.0
      %602 = vmatpush2.msra.mxu0 0.0
      %603 = vmatprep.subr.mxu0 0.0
      %604 = vmatpush2.msra.mxu0 0.0
      %605 = vmatprep.subr.mxu0 0.0
      %606 = vmatpush2.msra.mxu0 0.0
      %607 = vmatprep.subr.mxu0 0.0
      %608 = vmatpush2.msra.mxu0 0.0
      %609 = vmatprep.subr.mxu0 0.0
      %610 = vmatpush2.msra.mxu0 0.0
      %611 = vmatprep.mubr.f32.mxu0 0.0
      %612 = vmatmul.mubr.f32.gmra.mxu0 %v264
      %v613 = vpop.f32.mrf.mxu0
      %v614 = vadd.f32 %v545, %v613
      %v615 = vpop.f32.mrf.mxu0
      %616 = vmatprep.mubr.f32.mxu0 0.0
      %617 = vmatmul.mubr.f32.gmra.mxu0 %v267
      %v618 = vpop.f32.mrf.mxu0
      %v619 = vadd.f32 %v545, %v618
      %v620 = vpop.f32.mrf.mxu0
      %621 = vmatprep.mubr.f32.mxu0 0.0
      %622 = vmatmul.mubr.f32.gmra.mxu0 %v270
      %v623 = vpop.f32.mrf.mxu0
      %v624 = vadd.f32 %v545, %v623
      %v625 = vpop.f32.mrf.mxu0
      %626 = vmatprep.mubr.f32.mxu0 0.0
      %627 = vmatmul.mubr.f32.gmra.mxu0 %v273
      %v628 = vpop.f32.mrf.mxu0
      %v629 = vadd.f32 %v545, %v628
      %v630 = vpop.f32.mrf.mxu0
      %631 = vmatprep.mubr.f32.mxu0 0.0
      %632 = vmatmul.mubr.f32.gmra.mxu0 %v276
      %v633 = vpop.f32.mrf.mxu0
      %v634 = vadd.f32 %v545, %v633
      %v635 = vpop.f32.mrf.mxu0
      %636 = vmatprep.mubr.f32.mxu0 0.0
      %637 = vmatmul.mubr.f32.gmra.mxu0 %v279
      %v638 = vpop.f32.mrf.mxu0
      %v639 = vadd.f32 %v545, %v638
      %v640 = vpop.f32.mrf.mxu0
      %641 = vmatprep.mubr.f32.mxu0 0.0
      %642 = vmatmul.mubr.f32.gmra.mxu0 %v282
      %v643 = vpop.f32.mrf.mxu0
      %v644 = vadd.f32 %v545, %v643
      %v645 = vpop.f32.mrf.mxu0
      %646 = vmatprep.mubr.f32.mxu0 0.0
      %647 = vmatmul.mubr.f32.gmra.mxu0 %v285
      %v648 = vpop.f32.mrf.mxu0
      %v649 = vadd.f32 %v545, %v648
      %v650 = vpop.f32.mrf.mxu0
      %651 = vmatprep.mubr.f32.mxu0 0.0
      %652 = vmatmul.mubr.f32.gmra.mxu0 %v288
      %v653 = vpop.f32.mrf.mxu0
      %v654 = vadd.f32 %v545, %v653
      %v655 = vpop.f32.mrf.mxu0
      %656 = vmatprep.mubr.f32.mxu0 0.0
      %657 = vmatmul.mubr.f32.gmra.mxu0 %v291
      %v658 = vpop.f32.mrf.mxu0
      %v659 = vadd.f32 %v545, %v658
      %v660 = vpop.f32.mrf.mxu0
      %661 = vmatprep.mubr.f32.mxu0 0.0
      %662 = vmatmul.mubr.f32.gmra.mxu0 %v294
      %v663 = vpop.f32.mrf.mxu0
      %v664 = vadd.f32 %v545, %v663
      %v665 = vpop.f32.mrf.mxu0
      %666 = vmatprep.mubr.f32.mxu0 0.0
      %667 = vmatmul.mubr.f32.gmra.mxu0 %v297
      %v668 = vpop.f32.mrf.mxu0
      %v669 = vadd.f32 %v545, %v668
      %v670 = vpop.f32.mrf.mxu0
      %671 = vmatprep.mubr.f32.mxu0 0.0
      %672 = vmatmul.mubr.f32.gmra.mxu0 %v300
      %v673 = vpop.f32.mrf.mxu0
      %v674 = vadd.f32 %v545, %v673
      %v675 = vpop.f32.mrf.mxu0
      %676 = vmatprep.mubr.f32.mxu0 0.0
      %677 = vmatmul.mubr.f32.gmra.mxu0 %v303
      %v678 = vpop.f32.mrf.mxu0
      %v679 = vadd.f32 %v545, %v678
      %v680 = vpop.f32.mrf.mxu0
      %681 = vmatprep.mubr.f32.mxu0 0.0
      %682 = vmatmul.mubr.f32.gmra.mxu0 %v306
      %v683 = vpop.f32.mrf.mxu0
      %v684 = vadd.f32 %v545, %v683
      %v685 = vpop.f32.mrf.mxu0
      %686 = vmatprep.mubr.f32.mxu0 0.0
      %687 = vmatmul.mubr.f32.gmra.mxu0 %v309
      %v688 = vpop.f32.mrf.mxu0
      %v689 = vadd.f32 %v545, %v688
      %v690 = vpop.f32.mrf.mxu0
      %691 = vdwg.mxu0
      %692 = vst [vmem:[%s240] sm:$0xff] %v614
      %693 = vst [vmem:[%s240 + $0x8] sm:$0xff] %v619
      %694 = vst [vmem:[%s240 + $0x10] sm:$0xff] %v624
      %695 = vst [vmem:[%s240 + $0x18] sm:$0xff] %v629
      %696 = vst [vmem:[%s240 + $0x20] sm:$0xff] %v634
      %697 = vst [vmem:[%s240 + $0x28] sm:$0xff] %v639
      %698 = vst [vmem:[%s240 + $0x30] sm:$0xff] %v644
      %699 = vst [vmem:[%s240 + $0x38] sm:$0xff] %v649
      %700 = vst [vmem:[%s240 + $0x40] sm:$0xff] %v654
      %701 = vst [vmem:[%s240 + $0x48] sm:$0xff] %v659
      %702 = vst [vmem:[%s240 + $0x50] sm:$0xff] %v664
      %703 = vst [vmem:[%s240 + $0x58] sm:$0xff] %v669
      %704 = vst [vmem:[%s240 + $0x60] sm:$0xff] %v674
      %705 = vst [vmem:[%s240 + $0x68] sm:$0xff] %v679
      %706 = vst [vmem:[%s240 + $0x70] sm:$0xff] %v684
      %707 = vst [vmem:[%s240 + $0x78] sm:$0xff] %v689
      %s708 = smul.u32 16, %s17
      %p709 = scmp.lt.s32.totalorder %s708, 31
      %s710 = scalar_select %p709, %s708, 31
      %s711 = smul.addr %s710, 4
      %s712 = scalar_lea.vmem %s4, %s711
      %s713 = smul.u32 16, %s17
      %p714 = scmp.lt.s32.totalorder %s713, 31
      %s715 = scalar_select %p714, %s713, 31
      %s716 = smul.addr %s715, 8
      %s717 = scalar_lea.vmem %s5, %s716
      // Predicated region
      $region37: #{graphsage1_forward.2} parent=35 // pred_check
        %p718 = pneg %p124
      $region38: #{graphsage1_forward.2} parent=35 // pred_check_branch
        %720 = sbr.rel (%p718) target = $region40
      $region39: #{graphsage1_forward.2} parent=35 // pred_region
        %s721 = smul.u32 16, %s17
      $region40: #{graphsage1_forward.2} parent=35 // pred_fallthru
        _
      // Predicated region
      $region41: #{graphsage1_forward.2} parent=35 // pred_check
        %p722 = pneg %p150
      $region42: #{graphsage1_forward.2} parent=35 // pred_check_branch
        %724 = sbr.rel (%p722) target = $region44
      $region43: #{graphsage1_forward.2} parent=35 // pred_region
        %s725 = smul.u32 16, %s17
      $region44: #{graphsage1_forward.2} parent=35 // pred_fallthru
        _
    $region36: #{graphsage1_forward.2} parent=5 // pred_fallthru
      _
    %p726 = scmp.le.s32.totalorder 2, %s12
    // Predicated region
    $region45: #{graphsage1_forward.2} parent=5 // pred_check
      %p727 = pneg %p726
    $region46: #{graphsage1_forward.2} parent=5 // pred_check_branch
      %729 = sbr.rel (%p727) target = $region48
    $region47: #{graphsage1_forward.2} parent=5 // pred_region
      %s730 = ssub.s32 %s12, 2
      // Predicated region
      $region49: #{graphsage1_forward.2} parent=47 // pred_check
        %p731 = pneg %p130
      $region50: #{graphsage1_forward.2} parent=47 // pred_check_branch
        %733 = sbr.rel (%p731) target = $region52
      $region51: #{graphsage1_forward.2} parent=47 // pred_region
        %s734 = smul.u32 16, %s18
        %p735 = scmp.lt.s32.totalorder %s734, 31
        %s736 = scalar_select %p735, %s734, 31
        %s737 = smul.addr %s736, 4
        %s738 = scalar_lea.vmem %s4, %s737
      $region52: #{graphsage1_forward.2} parent=47 // pred_fallthru
        _
      // Predicated region
      $region53: #{graphsage1_forward.2} parent=47 // pred_check
        %p739 = pneg %p156
      $region54: #{graphsage1_forward.2} parent=47 // pred_check_branch
        %741 = sbr.rel (%p739) target = $region56
      $region55: #{graphsage1_forward.2} parent=47 // pred_region
        %s742 = smul.u32 16, %s18
        %p743 = scmp.lt.s32.totalorder %s742, 31
        %s744 = scalar_select %p743, %s742, 31
        %s745 = smul.addr %s744, 8
        %s746 = scalar_lea.vmem %s5, %s745
      $region56: #{graphsage1_forward.2} parent=47 // pred_fallthru
        _
    $region48: #{graphsage1_forward.2} parent=5 // pred_fallthru
      _
  $region6: #{graphsage1_forward.2} parent=0 // loop_footer
    %s16 = sadd.s32 1, %s12
  $region7: #{graphsage1_forward.2} parent=0 // loop_footer_branch
    %11 = sbr.rel target = $region3
  $region8: #{graphsage1_forward.2} parent=0 // loop_exit
    _

// kernel: graphsage1_forward.3
$region0: #{graphsage1_forward.3}
  #allocation0 [shape = 'u32[]', space=smem, size = 0x4, offset = 0x4, fixed_abs, tag = 'smem constant byte address 0x4 - core index']
  #allocation1 [shape = 'u32[144,128]{1,0:T(1,128)}', space=vmem, size = 0x12000, scoped, tag = 'internal scratch']
  #allocation2 [shape = 'f32[128,128]{1,0:T(8,128)}', space=vmem, size = 0x10000, scoped, tag = 'scratch operand']
  %s0 = inlined_call_operand.vmem [shape: s8[256,256], index: 0, kind: input, shape index: {}]
  %s1 = inlined_call_operand.vmem [shape: bf16[256,128], index: 1, kind: input, shape index: {}]
  %s2 = inlined_call_operand.vmem [shape: f32[256,128], index: 2, kind: input, shape index: {}]
  %s3 = inlined_call_operand.vmem [shape: f32[256,1], index: 3, kind: input, shape index: {}]
  %s4 = inlined_call_operand.vmem [shape: f32[256,128], index: 4, kind: output, shape index: {}]
  %s5 = sld [smem:[#allocation0]]
  $region57: #{graphsage1_forward.3} parent=0
    _
  %s7 = ssub.s32 1, %s5
  %s8 = scalar_select 0, %s7, %s5
  loop: start=0, step=1, limit=4
  $region2: #{graphsage1_forward.3} parent=0 // loop_pre_header
    _
  $region3: #{graphsage1_forward.3} parent=0 // loop_header
    %s10 = sphi 0, %s14
    %p11 = scmp.ge.s32.totalorder %s10, 4
    %s17 = sphi 0, %s29
    %s18 = sphi 0, %s25
    %s19 = sphi 0, %s17
    %s20 = sphi 0, %s18
    %s21 = sphi 0, %s19
    %s22 = sphi 0, %s20
    %s34 = sphi 0, %s36
    %s37 = sphi 0, %s34
    %s38 = sphi 0, %s37
    %s54 = sphi 0, %s38
    %s60 = sphi 0, %s62
    %s63 = sphi 0, %s60
    %s64 = sphi 0, %s63
    %s80 = sphi 0, %s64
    %s86 = sphi 0, %s88
    %s89 = sphi 0, %s86
    %s90 = sphi 0, %s89
    %s106 = sphi 0, %s90
    %s112 = sphi 0, %s114
    %s115 = sphi 0, %s112
    %s116 = sphi 0, %s115
    %s132 = sphi 0, %s116
    %s138 = sphi 0, %s140
    %s141 = sphi 0, %s138
    %s142 = sphi 0, %s141
    %s158 = sphi 0, %s142
  $region4: #{graphsage1_forward.3} parent=0 // loop_header_branch
    %13 = sbr.rel (%p11) target = $region8
  $region5: #{graphsage1_forward.3} parent=0 // loop_body
    %s15 = ssub.s32 %s10, 1
    %s16 = ssub.s32 %s10, 2
    %s23 = sadd.s32 1, %s18
    %p24 = scmp.ge.s32.totalorder %s23, 1
    %s25 = scalar_select %p24, 0, %s23
    %s26 = sadd.s32 1, %s17
    %s27 = scalar_select %p24, %s26, %s17
    %p28 = scmp.ge.s32.totalorder %s27, 2
    %s29 = scalar_select %p28, 0, %s27
    %s30 = ssub.s32 %s17, %s29
    %s31 = ssub.s32 %s18, %s25
    %s32 = sor.u32 %s30, %s31
    %p33 = scmp.eq.s32.totalorder %s32, 0
    %s35 = sadd.s32 %s34, 1
    %s36 = scalar_select %p33, %s34, %s35
    %p39 = pneg %p33
    %p40 = scmp.eq.s32.totalorder %s10, 1
    %p41 = por %p39, %p40
    %p42 = scmp.ne.s32.totalorder %s34, %s37
    %p43 = scmp.eq.s32.totalorder %s10, 0
    %p44 = por %p42, %p43
    %p45 = scmp.ne.s32.totalorder %s34, %s37
    %p46 = scmp.eq.s32.totalorder %s15, 1
    %p47 = por %p45, %p46
    %p48 = scmp.ne.s32.totalorder %s37, %s38
    %p49 = scmp.eq.s32.totalorder %s15, 0
    %p50 = por %p48, %p49
    %p51 = scmp.ne.s32.totalorder %s37, %s38
    %p52 = scmp.eq.s32.totalorder %s16, 1
    %p53 = por %p51, %p52
    %p55 = scmp.ne.s32.totalorder %s38, %s54
    %p56 = scmp.eq.s32.totalorder %s16, 0
    %p57 = por %p55, %p56
    %s58 = ssub.s32 %s18, %s25
    %p59 = scmp.eq.s32.totalorder %s58, 0
    %s61 = sadd.s32 %s60, 1
    %s62 = scalar_select %p59, %s60, %s61
    %p65 = pneg %p59
    %p66 = scmp.eq.s32.totalorder %s10, 1
    %p67 = por %p65, %p66
    %p68 = scmp.ne.s32.totalorder %s60, %s63
    %p69 = scmp.eq.s32.totalorder %s10, 0
    %p70 = por %p68, %p69
    %p71 = scmp.ne.s32.totalorder %s60, %s63
    %p72 = scmp.eq.s32.totalorder %s15, 1
    %p73 = por %p71, %p72
    %p74 = scmp.ne.s32.totalorder %s63, %s64
    %p75 = scmp.eq.s32.totalorder %s15, 0
    %p76 = por %p74, %p75
    %p77 = scmp.ne.s32.totalorder %s63, %s64
    %p78 = scmp.eq.s32.totalorder %s16, 1
    %p79 = por %p77, %p78
    %p81 = scmp.ne.s32.totalorder %s64, %s80
    %p82 = scmp.eq.s32.totalorder %s16, 0
    %p83 = por %p81, %p82
    %s84 = ssub.s32 %s17, %s29
    %p85 = scmp.eq.s32.totalorder %s84, 0
    %s87 = sadd.s32 %s86, 1
    %s88 = scalar_select %p85, %s86, %s87
    %p91 = pneg %p85
    %p92 = scmp.eq.s32.totalorder %s10, 1
    %p93 = por %p91, %p92
    %p94 = scmp.ne.s32.totalorder %s86, %s89
    %p95 = scmp.eq.s32.totalorder %s10, 0
    %p96 = por %p94, %p95
    %p97 = scmp.ne.s32.totalorder %s86, %s89
    %p98 = scmp.eq.s32.totalorder %s15, 1
    %p99 = por %p97, %p98
    %p100 = scmp.ne.s32.totalorder %s89, %s90
    %p101 = scmp.eq.s32.totalorder %s15, 0
    %p102 = por %p100, %p101
    %p103 = scmp.ne.s32.totalorder %s89, %s90
    %p104 = scmp.eq.s32.totalorder %s16, 1
    %p105 = por %p103, %p104
    %p107 = scmp.ne.s32.totalorder %s90, %s106
    %p108 = scmp.eq.s32.totalorder %s16, 0
    %p109 = por %p107, %p108
    %s110 = ssub.s32 %s17, %s29
    %p111 = scmp.eq.s32.totalorder %s110, 0
    %s113 = sadd.s32 %s112, 1
    %s114 = scalar_select %p111, %s112, %s113
    %p117 = pneg %p111
    %p118 = scmp.eq.s32.totalorder %s10, 1
    %p119 = por %p117, %p118
    %p120 = scmp.ne.s32.totalorder %s112, %s115
    %p121 = scmp.eq.s32.totalorder %s10, 0
    %p122 = por %p120, %p121
    %p123 = scmp.ne.s32.totalorder %s112, %s115
    %p124 = scmp.eq.s32.totalorder %s15, 1
    %p125 = por %p123, %p124
    %p126 = scmp.ne.s32.totalorder %s115, %s116
    %p127 = scmp.eq.s32.totalorder %s15, 0
    %p128 = por %p126, %p127
    %p129 = scmp.ne.s32.totalorder %s115, %s116
    %p130 = scmp.eq.s32.totalorder %s16, 1
    %p131 = por %p129, %p130
    %p133 = scmp.ne.s32.totalorder %s116, %s132
    %p134 = scmp.eq.s32.totalorder %s16, 0
    %p135 = por %p133, %p134
    %s136 = ssub.s32 %s17, %s29
    %p137 = scmp.eq.s32.totalorder %s136, 0
    %s139 = sadd.s32 %s138, 1
    %s140 = scalar_select %p137, %s138, %s139
    %p143 = pneg %p137
    %p144 = scmp.eq.s32.totalorder %s10, 1
    %p145 = por %p143, %p144
    %p146 = scmp.ne.s32.totalorder %s138, %s141
    %p147 = scmp.eq.s32.totalorder %s10, 0
    %p148 = por %p146, %p147
    %p149 = scmp.ne.s32.totalorder %s138, %s141
    %p150 = scmp.eq.s32.totalorder %s15, 1
    %p151 = por %p149, %p150
    %p152 = scmp.ne.s32.totalorder %s141, %s142
    %p153 = scmp.eq.s32.totalorder %s15, 0
    %p154 = por %p152, %p153
    %p155 = scmp.ne.s32.totalorder %s141, %s142
    %p156 = scmp.eq.s32.totalorder %s16, 1
    %p157 = por %p155, %p156
    %p159 = scmp.ne.s32.totalorder %s142, %s158
    %p160 = scmp.eq.s32.totalorder %s16, 0
    %p161 = por %p159, %p160
    %p162 = scmp.le.s32.totalorder 1, %s10
    %p163 = scmp.lt.s32.totalorder %s10, 3
    %p164 = pnand %p162, %p163
    %p165 = pneg %p164
    // Predicated region
    $region9: #{graphsage1_forward.3} parent=5 // pred_check
      _
    $region10: #{graphsage1_forward.3} parent=5 // pred_check_branch
      %167 = sbr.rel (%p164) target = $region12
    $region11: #{graphsage1_forward.3} parent=5 // pred_region
      %s168 = ssub.s32 %s10, 1
      // Predicated region
      $region13: #{graphsage1_forward.3} parent=11 // pred_check
        %p169 = pneg %p76
      $region14: #{graphsage1_forward.3} parent=11 // pred_check_branch
        %171 = sbr.rel (%p169) target = $region16
      $region15: #{graphsage1_forward.3} parent=11 // pred_region
        %s172 = smul.u32 32, %s20
        %p173 = scmp.lt.s32.totalorder %s172, 31
        %s174 = scalar_select %p173, %s172, 31
        %s175 = smul.addr %s174, 4
        %s176 = scalar_lea.vmem %s1, %s175
        %s177 = smul.u32 32, %s20
      $region16: #{graphsage1_forward.3} parent=11 // pred_fallthru
        _
    $region12: #{graphsage1_forward.3} parent=5 // pred_fallthru
      _
    %p178 = scmp.lt.s32.totalorder %s10, 2
    // Predicated region
    $region17: #{graphsage1_forward.3} parent=5 // pred_check
      %p179 = pneg %p178
    $region18: #{graphsage1_forward.3} parent=5 // pred_check_branch
      %181 = sbr.rel (%p179) target = $region20
    $region19: #{graphsage1_forward.3} parent=5 // pred_region
      // Predicated region
      $region21: #{graphsage1_forward.3} parent=19 // pred_check
        %p182 = pneg %p44
      $region22: #{graphsage1_forward.3} parent=19 // pred_check_branch
        %184 = sbr.rel (%p182) target = $region24
      $region23: #{graphsage1_forward.3} parent=19 // pred_region
        %s185 = smul.u32 4, %s17
        %s186 = smul.u32 2, %s18
        %p187 = scmp.lt.s32.totalorder %s185, 7
        %s188 = scalar_select %p187, %s185, 7
        %p189 = scmp.lt.s32.totalorder %s186, 1
        %s190 = scalar_select %p189, %s186, 1
        %s191 = smul.addr %s188, 2
        %s192 = sadd.s32 %s190, %s191
        %s193 = smul.addr %s192, 8
        %s194 = scalar_lea.vmem %s0, %s193
        %s195 = smul.u32 4, %s17
        %s196 = smul.u32 2, %s18
      $region24: #{graphsage1_forward.3} parent=19 // pred_fallthru
        _
      // Predicated region
      $region25: #{graphsage1_forward.3} parent=19 // pred_check
        %p197 = pneg %p96
      $region26: #{graphsage1_forward.3} parent=19 // pred_check_branch
        %199 = sbr.rel (%p197) target = $region28
      $region27: #{graphsage1_forward.3} parent=19 // pred_region
        %s200 = smul.u32 16, %s17
        %p201 = scmp.lt.s32.totalorder %s200, 31
        %s202 = scalar_select %p201, %s200, 31
        %s203 = smul.addr %s202, 8
        %s204 = scalar_lea.vmem %s2, %s203
        %s205 = smul.u32 16, %s17
      $region28: #{graphsage1_forward.3} parent=19 // pred_fallthru
        _
      // Predicated region
      $region29: #{graphsage1_forward.3} parent=19 // pred_check
        %p206 = pneg %p122
      $region30: #{graphsage1_forward.3} parent=19 // pred_check_branch
        %208 = sbr.rel (%p206) target = $region32
      $region31: #{graphsage1_forward.3} parent=19 // pred_region
        %s209 = smul.u32 16, %s17
        %p210 = scmp.lt.s32.totalorder %s209, 31
        %s211 = scalar_select %p210, %s209, 31
        %s212 = smul.addr %s211, 8
        %s213 = scalar_lea.vmem %s3, %s212
        %s214 = smul.u32 16, %s17
      $region32: #{graphsage1_forward.3} parent=19 // pred_fallthru
        _
    $region20: #{graphsage1_forward.3} parent=5 // pred_fallthru
      _
    %p215 = scmp.le.s32.totalorder 1, %s10
    %p216 = scmp.lt.s32.totalorder %s10, 3
    %p217 = pnand %p215, %p216
    %p218 = pneg %p217
    // Predicated region
    $region33: #{graphsage1_forward.3} parent=5 // pred_check
      _
    $region34: #{graphsage1_forward.3} parent=5 // pred_check_branch
      %220 = sbr.rel (%p217) target = $region36
    $region35: #{graphsage1_forward.3} parent=5 // pred_region
      %s221 = ssub.s32 %s10, 1
      %s222 = smul.u32 4, %s19
      %s223 = smul.u32 2, %s20
      %p224 = scmp.lt.s32.totalorder %s222, 7
      %s225 = scalar_select %p224, %s222, 7
      %p226 = scmp.lt.s32.totalorder %s223, 1
      %s227 = scalar_select %p226, %s223, 1
      %s228 = smul.addr %s225, 2
      %s229 = sadd.s32 %s227, %s228
      %s230 = smul.addr %s229, 8
      %s231 = scalar_lea.vmem %s0, %s230
      %p232 = pneg %p50
      %p233 = pneg %p47
      %s234 = smul.u32 32, %s20
      %p235 = scmp.lt.s32.totalorder %s234, 31
      %s236 = scalar_select %p235, %s234, 31
      %s237 = smul.addr %s236, 4
      %s238 = scalar_lea.vmem %s1, %s237
      %p239 = pneg %p76
      %p240 = pneg %p73
      %s241 = smul.u32 16, %s19
      %p242 = scmp.lt.s32.totalorder %s241, 31
      %s243 = scalar_select %p242, %s241, 31
      %s244 = smul.addr %s243, 8
      %s245 = scalar_lea.vmem %s2, %s244
      %p246 = pneg %p102
      %p247 = pneg %p99
      %s248 = smul.u32 16, %s19
      %p249 = scmp.lt.s32.totalorder %s248, 31
      %s250 = scalar_select %p249, %s248, 31
      %s251 = smul.addr %s250, 8
      %s252 = scalar_lea.vmem %s3, %s251
      %p253 = pneg %p128
      %p254 = pneg %p125
      %p255 = pneg %p154
      %p256 = pneg %p151
      %s257 = smul.u32 16, %s19
      %p258 = scmp.lt.s32.totalorder %s257, 31
      %s259 = scalar_select %p258, %s257, 31
      %s260 = smul.addr %s259, 8
      %s261 = scalar_lea.vmem %s4, %s260
      %s262 = smul.u32 4, %s19
      %s263 = smul.u32 2, %s20
      %p264 = scmp.lt.s32.totalorder %s262, 7
      %s265 = scalar_select %p264, %s262, 7
      %p266 = scmp.lt.s32.totalorder %s263, 1
      %s267 = scalar_select %p266, %s263, 1
      %s268 = smul.addr %s265, 2
      %s269 = sadd.s32 %s267, %s268
      %s270 = smul.addr %s269, 8
      %s271 = scalar_lea.vmem %s0, %s270
      %s272 = smul.u32 4, %s19
      %s273 = smul.u32 2, %s20
      %s274 = smul.u32 32, %s20
      %p275 = scmp.lt.s32.totalorder %s274, 31
      %s276 = scalar_select %p275, %s274, 31
      %s277 = smul.addr %s276, 4
      %s278 = scalar_lea.vmem %s1, %s277
      %s279 = smul.u32 32, %s20
      %s280 = smul.u32 16, %s19
      %p281 = scmp.lt.s32.totalorder %s280, 31
      %s282 = scalar_select %p281, %s280, 31
      %s283 = smul.addr %s282, 8
      %s284 = scalar_lea.vmem %s2, %s283
      %s285 = smul.u32 16, %s19
      %s286 = smul.u32 16, %s19
      %p287 = scmp.lt.s32.totalorder %s286, 31
      %s288 = scalar_select %p287, %s286, 31
      %s289 = smul.addr %s288, 8
      %s290 = scalar_lea.vmem %s3, %s289
      %s291 = smul.u32 16, %s19
      %s292 = smul.u32 16, %s19
      %p293 = scmp.lt.s32.totalorder %s292, 31
      %s294 = scalar_select %p293, %s292, 31
      %s295 = smul.addr %s294, 8
      %s296 = scalar_lea.vmem %s4, %s295
      %s297 = smul.u32 16, %s19
      %p299 = scmp.eq.s32.totalorder %s20, 0
      // Predicated region
      $region37: #{graphsage1_forward.3} parent=35 // pred_check
        %p300 = pneg %p299
      $region38: #{graphsage1_forward.3} parent=35 // pred_check_branch
        %302 = sbr.rel (%p300) target = $region40
      $region39: #{graphsage1_forward.3} parent=35 // pred_region
        %303 = vst [vmem:[#allocation2] sm:$0xff] 0.0
        %304 = vst [vmem:[#allocation2 + $0x8] sm:$0xff] 0.0
        %305 = vst [vmem:[#allocation2 + $0x10] sm:$0xff] 0.0
        %306 = vst [vmem:[#allocation2 + $0x18] sm:$0xff] 0.0
        %307 = vst [vmem:[#allocation2 + $0x20] sm:$0xff] 0.0
        %308 = vst [vmem:[#allocation2 + $0x28] sm:$0xff] 0.0
        %309 = vst [vmem:[#allocation2 + $0x30] sm:$0xff] 0.0
        %310 = vst [vmem:[#allocation2 + $0x38] sm:$0xff] 0.0
        %311 = vst [vmem:[#allocation2 + $0x40] sm:$0xff] 0.0
        %312 = vst [vmem:[#allocation2 + $0x48] sm:$0xff] 0.0
        %313 = vst [vmem:[#allocation2 + $0x50] sm:$0xff] 0.0
        %314 = vst [vmem:[#allocation2 + $0x58] sm:$0xff] 0.0
        %315 = vst [vmem:[#allocation2 + $0x60] sm:$0xff] 0.0
        %316 = vst [vmem:[#allocation2 + $0x68] sm:$0xff] 0.0
        %317 = vst [vmem:[#allocation2 + $0x70] sm:$0xff] 0.0
        %318 = vst [vmem:[#allocation2 + $0x78] sm:$0xff] 0.0
      $region40: #{graphsage1_forward.3} parent=35 // pred_fallthru
        _
      %v319 = vld [vmem:[%s271] sm:$0xff]
      %v320 = vld [vmem:[%s271 + $0x8] sm:$0xff]
      %v321 = vld [vmem:[%s271 + $0x10] sm:$0xff]
      %v322 = vld [vmem:[%s271 + $0x18] sm:$0xff]
      %v323 = vld [vmem:[%s271 + $0x20] sm:$0xff]
      %v324 = vld [vmem:[%s271 + $0x28] sm:$0xff]
      %v325 = vld [vmem:[%s271 + $0x30] sm:$0xff]
      %v326 = vld [vmem:[%s271 + $0x38] sm:$0xff]
      %v327 = vunpack.c.l.s8.bf16 %v319
      %v328 = vunpack.c.l.s8.bf16 %v320
      %v329 = vunpack.c.h.s8.bf16 %v319
      %v330 = vunpack.c.h.s8.bf16 %v320
      %v331 = vunpack.c.l.s8.bf16 %v321
      %v332 = vunpack.c.l.s8.bf16 %v322
      %v333 = vunpack.c.h.s8.bf16 %v321
      %v334 = vunpack.c.h.s8.bf16 %v322
      %v335 = vunpack.c.l.s8.bf16 %v323
      %v336 = vunpack.c.l.s8.bf16 %v324
      %v337 = vunpack.c.h.s8.bf16 %v323
      %v338 = vunpack.c.h.s8.bf16 %v324
      %v339 = vunpack.c.l.s8.bf16 %v325
      %v340 = vunpack.c.l.s8.bf16 %v326
      %v341 = vunpack.c.h.s8.bf16 %v325
      %v342 = vunpack.c.h.s8.bf16 %v326
      %v343 = vld [vmem:[#allocation2] sm:$0xff]
      %v344 = vld [vmem:[#allocation2 + $0x8] sm:$0xff]
      %v345 = vld [vmem:[#allocation2 + $0x10] sm:$0xff]
      %v346 = vld [vmem:[#allocation2 + $0x18] sm:$0xff]
      %v347 = vld [vmem:[#allocation2 + $0x20] sm:$0xff]
      %v348 = vld [vmem:[#allocation2 + $0x28] sm:$0xff]
      %v349 = vld [vmem:[#allocation2 + $0x30] sm:$0xff]
      %v350 = vld [vmem:[#allocation2 + $0x38] sm:$0xff]
      %v351 = vld [vmem:[#allocation2 + $0x40] sm:$0xff]
      %v352 = vld [vmem:[#allocation2 + $0x48] sm:$0xff]
      %v353 = vld [vmem:[#allocation2 + $0x50] sm:$0xff]
      %v354 = vld [vmem:[#allocation2 + $0x58] sm:$0xff]
      %v355 = vld [vmem:[#allocation2 + $0x60] sm:$0xff]
      %v356 = vld [vmem:[#allocation2 + $0x68] sm:$0xff]
      %v357 = vld [vmem:[#allocation2 + $0x70] sm:$0xff]
      %v358 = vld [vmem:[#allocation2 + $0x78] sm:$0xff]
      %v359 = vld [vmem:[%s278] sm:$0xf]
      %v360 = vld [vmem:[%s278 + $0x4] sm:$0xf]
      %v361 = vld [vmem:[%s278 + $0x8] sm:$0xf]
      %v362 = vld [vmem:[%s278 + $0xc] sm:$0xf]
      %v363 = vld [vmem:[%s278 + $0x10] sm:$0xf]
      %v364 = vld [vmem:[%s278 + $0x14] sm:$0xf]
      %v365 = vld [vmem:[%s278 + $0x18] sm:$0xf]
      %v366 = vld [vmem:[%s278 + $0x1c] sm:$0xf]
      %v367 = vld [vmem:[%s278 + $0x20] sm:$0xf]
      %v368 = vld [vmem:[%s278 + $0x24] sm:$0xf]
      %v369 = vld [vmem:[%s278 + $0x28] sm:$0xf]
      %v370 = vld [vmem:[%s278 + $0x2c] sm:$0xf]
      %v371 = vld [vmem:[%s278 + $0x30] sm:$0xf]
      %v372 = vld [vmem:[%s278 + $0x34] sm:$0xf]
      %v373 = vld [vmem:[%s278 + $0x38] sm:$0xf]
      %v374 = vld [vmem:[%s278 + $0x3c] sm:$0xf]
      %v375 = vld [vmem:[%s278 + $0x40] sm:$0xf]
      %v376 = vld [vmem:[%s278 + $0x44] sm:$0xf]
      %v377 = vld [vmem:[%s278 + $0x48] sm:$0xf]
      %v378 = vld [vmem:[%s278 + $0x4c] sm:$0xf]
      %v379 = vld [vmem:[%s278 + $0x50] sm:$0xf]
      %v380 = vld [vmem:[%s278 + $0x54] sm:$0xf]
      %v381 = vld [vmem:[%s278 + $0x58] sm:$0xf]
      %v382 = vld [vmem:[%s278 + $0x5c] sm:$0xf]
      %v383 = vld [vmem:[%s278 + $0x60] sm:$0xf]
      %v384 = vld [vmem:[%s278 + $0x64] sm:$0xf]
      %v385 = vld [vmem:[%s278 + $0x68] sm:$0xf]
      %v386 = vld [vmem:[%s278 + $0x6c] sm:$0xf]
      %v387 = vld [vmem:[%s278 + $0x70] sm:$0xf]
      %v388 = vld [vmem:[%s278 + $0x74] sm:$0xf]
      %v389 = vld [vmem:[%s278 + $0x78] sm:$0xf]
      %v390 = vld [vmem:[%s278 + $0x7c] sm:$0xf]
      %v423 = vunpack.c.l.b16 %v359
      %v424 = vunpack.c.l.b16 %v360
      %v425 = vunpack.c.l.b16 %v361
      %v426 = vunpack.c.l.b16 %v362
      %v427 = vunpack.c.l.b16 %v363
      %v428 = vunpack.c.l.b16 %v364
      %v429 = vunpack.c.l.b16 %v365
      %v430 = vunpack.c.l.b16 %v366
      %v431 = vunpack.c.l.b16 %v367
      %v432 = vunpack.c.l.b16 %v368
      %v433 = vunpack.c.l.b16 %v369
      %v434 = vunpack.c.l.b16 %v370
      %v435 = vunpack.c.l.b16 %v371
      %v436 = vunpack.c.l.b16 %v372
      %v437 = vunpack.c.l.b16 %v373
      %v438 = vunpack.c.l.b16 %v374
      %v439 = vunpack.c.l.b16 %v375
      %v440 = vunpack.c.l.b16 %v376
      %v441 = vunpack.c.l.b16 %v377
      %v442 = vunpack.c.l.b16 %v378
      %v443 = vunpack.c.l.b16 %v379
      %v444 = vunpack.c.l.b16 %v380
      %v445 = vunpack.c.l.b16 %v381
      %v446 = vunpack.c.l.b16 %v382
      %v447 = vunpack.c.l.b16 %v383
      %v448 = vunpack.c.l.b16 %v384
      %v449 = vunpack.c.l.b16 %v385
      %v450 = vunpack.c.l.b16 %v386
      %v451 = vunpack.c.l.b16 %v387
      %v452 = vunpack.c.l.b16 %v388
      %v453 = vunpack.c.l.b16 %v389
      %v454 = vunpack.c.l.b16 %v390
      %v455 = vpack.c.b16 %v424, %v423
      %v456 = vpack.c.b16 %v426, %v425
      %v457 = vpack.c.b16 %v428, %v427
      %v458 = vpack.c.b16 %v430, %v429
      %v459 = vpack.c.b16 %v432, %v431
      %v460 = vpack.c.b16 %v434, %v433
      %v461 = vpack.c.b16 %v436, %v435
      %v462 = vpack.c.b16 %v438, %v437
      %v463 = vpack.c.b16 %v440, %v439
      %v464 = vpack.c.b16 %v442, %v441
      %v465 = vpack.c.b16 %v444, %v443
      %v466 = vpack.c.b16 %v446, %v445
      %v467 = vpack.c.b16 %v448, %v447
      %v468 = vpack.c.b16 %v450, %v449
      %v469 = vpack.c.b16 %v452, %v451
      %v470 = vpack.c.b16 %v454, %v453
      %487 = vmatprep.subr.bf16.mxu0 0
      %488 = vmatpush1.bf16.msra.mxu0 %v462
      %489 = vmatprep.subr.bf16.mxu0 0
      %490 = vmatpush1.bf16.msra.mxu0 %v461
      %491 = vmatprep.subr.bf16.mxu0 0
      %492 = vmatpush1.bf16.msra.mxu0 %v460
      %493 = vmatprep.subr.bf16.mxu0 0
      %494 = vmatpush1.bf16.msra.mxu0 %v459
      %495 = vmatprep.subr.bf16.mxu0 0
      %496 = vmatpush1.bf16.msra.mxu0 %v458
      %497 = vmatprep.subr.bf16.mxu0 0
      %498 = vmatpush1.bf16.msra.mxu0 %v457
      %499 = vmatprep.subr.bf16.mxu0 0
      %500 = vmatpush1.bf16.msra.mxu0 %v456
      %501 = vmatprep.subr.bf16.mxu0 0
      %502 = vmatpush1.bf16.msra.mxu0 %v455
      %503 = vmatprep.subr.bf16.mxu0 0
      %504 = vmatpush2.bf16.msra.mxu0 %v470
      %505 = vmatprep.subr.bf16.mxu0 0
      %506 = vmatpush2.bf16.msra.mxu0 %v469
      %507 = vmatprep.subr.bf16.mxu0 0
      %508 = vmatpush2.bf16.msra.mxu0 %v468
      %509 = vmatprep.subr.bf16.mxu0 0
      %510 = vmatpush2.bf16.msra.mxu0 %v467
      %511 = vmatprep.subr.bf16.mxu0 0
      %512 = vmatpush2.bf16.msra.mxu0 %v466
      %513 = vmatprep.subr.bf16.mxu0 0
      %514 = vmatpush2.bf16.msra.mxu0 %v465
      %515 = vmatprep.subr.bf16.mxu0 0
      %516 = vmatpush2.bf16.msra.mxu0 %v464
      %517 = vmatprep.subr.bf16.mxu0 0
      %518 = vmatpush2.bf16.msra.mxu0 %v463
      %519 = vmatprep.mubr.bf16.mxu0 %v328
      %520 = vmatmul.mubr.bf16.gmra.mxu0 %v327
      %v521 = vpop.f32.mrf.mxu0
      %v522 = vadd.f32 0.0, %v521
      %v523 = vpop.f32.mrf.mxu0
      %v524 = vpop.f32.mrf.mxu0
      %v525 = vadd.f32 0.0, %v524
      %v526 = vpop.f32.mrf.mxu0
      %527 = vmatprep.mubr.bf16.mxu0 %v330
      %528 = vmatmul.mubr.bf16.gmra.mxu0 %v329
      %v529 = vpop.f32.mrf.mxu0
      %v530 = vadd.f32 0.0, %v529
      %v531 = vpop.f32.mrf.mxu0
      %v532 = vpop.f32.mrf.mxu0
      %v533 = vadd.f32 0.0, %v532
      %v534 = vpop.f32.mrf.mxu0
      %535 = vmatprep.mubr.bf16.mxu0 %v332
      %536 = vmatmul.mubr.bf16.gmra.mxu0 %v331
      %v537 = vpop.f32.mrf.mxu0
      %v538 = vadd.f32 0.0, %v537
      %v539 = vpop.f32.mrf.mxu0
      %v540 = vpop.f32.mrf.mxu0
      %v541 = vadd.f32 0.0, %v540
      %v542 = vpop.f32.mrf.mxu0
      %543 = vmatprep.mubr.bf16.mxu0 %v334
      %544 = vmatmul.mubr.bf16.gmra.mxu0 %v333
      %v545 = vpop.f32.mrf.mxu0
      %v546 = vadd.f32 0.0, %v545
      %v547 = vpop.f32.mrf.mxu0
      %v548 = vpop.f32.mrf.mxu0
      %v549 = vadd.f32 0.0, %v548
      %v550 = vpop.f32.mrf.mxu0
      %551 = vmatprep.mubr.bf16.mxu0 %v336
      %552 = vmatmul.mubr.bf16.gmra.mxu0 %v335
      %v553 = vpop.f32.mrf.mxu0
      %v554 = vadd.f32 0.0, %v553
      %v555 = vpop.f32.mrf.mxu0
      %v556 = vpop.f32.mrf.mxu0
      %v557 = vadd.f32 0.0, %v556
      %v558 = vpop.f32.mrf.mxu0
      %559 = vmatprep.mubr.bf16.mxu0 %v338
      %560 = vmatmul.mubr.bf16.gmra.mxu0 %v337
      %v561 = vpop.f32.mrf.mxu0
      %v562 = vadd.f32 0.0, %v561
      %v563 = vpop.f32.mrf.mxu0
      %v564 = vpop.f32.mrf.mxu0
      %v565 = vadd.f32 0.0, %v564
      %v566 = vpop.f32.mrf.mxu0
      %567 = vmatprep.mubr.bf16.mxu0 %v340
      %568 = vmatmul.mubr.bf16.gmra.mxu0 %v339
      %v569 = vpop.f32.mrf.mxu0
      %v570 = vadd.f32 0.0, %v569
      %v571 = vpop.f32.mrf.mxu0
      %v572 = vpop.f32.mrf.mxu0
      %v573 = vadd.f32 0.0, %v572
      %v574 = vpop.f32.mrf.mxu0
      %575 = vmatprep.mubr.bf16.mxu0 %v342
      %576 = vmatmul.mubr.bf16.gmra.mxu0 %v341
      %v577 = vpop.f32.mrf.mxu0
      %v578 = vadd.f32 0.0, %v577
      %v579 = vpop.f32.mrf.mxu0
      %v580 = vpop.f32.mrf.mxu0
      %v581 = vadd.f32 0.0, %v580
      %v582 = vpop.f32.mrf.mxu0
      %583 = vdwg.mxu0
      %v584 = vadd.f32 %v343, %v522
      %v585 = vadd.f32 %v344, %v525
      %v586 = vadd.f32 %v345, %v530
      %v587 = vadd.f32 %v346, %v533
      %v588 = vadd.f32 %v347, %v538
      %v589 = vadd.f32 %v348, %v541
      %v590 = vadd.f32 %v349, %v546
      %v591 = vadd.f32 %v350, %v549
      %v592 = vadd.f32 %v351, %v554
      %v593 = vadd.f32 %v352, %v557
      %v594 = vadd.f32 %v353, %v562
      %v595 = vadd.f32 %v354, %v565
      %v596 = vadd.f32 %v355, %v570
      %v597 = vadd.f32 %v356, %v573
      %v598 = vadd.f32 %v357, %v578
      %v599 = vadd.f32 %v358, %v581
      %600 = vst [vmem:[#allocation2] sm:$0xff] %v584
      %601 = vst [vmem:[#allocation2 + $0x8] sm:$0xff] %v585
      %602 = vst [vmem:[#allocation2 + $0x10] sm:$0xff] %v586
      %603 = vst [vmem:[#allocation2 + $0x18] sm:$0xff] %v587
      %604 = vst [vmem:[#allocation2 + $0x20] sm:$0xff] %v588
      %605 = vst [vmem:[#allocation2 + $0x28] sm:$0xff] %v589
      %606 = vst [vmem:[#allocation2 + $0x30] sm:$0xff] %v590
      %607 = vst [vmem:[#allocation2 + $0x38] sm:$0xff] %v591
      %608 = vst [vmem:[#allocation2 + $0x40] sm:$0xff] %v592
      %609 = vst [vmem:[#allocation2 + $0x48] sm:$0xff] %v593
      %610 = vst [vmem:[#allocation2 + $0x50] sm:$0xff] %v594
      %611 = vst [vmem:[#allocation2 + $0x58] sm:$0xff] %v595
      %612 = vst [vmem:[#allocation2 + $0x60] sm:$0xff] %v596
      %613 = vst [vmem:[#allocation2 + $0x68] sm:$0xff] %v597
      %614 = vst [vmem:[#allocation2 + $0x70] sm:$0xff] %v598
      %615 = vst [vmem:[#allocation2 + $0x78] sm:$0xff] %v599
      // Predicated region
      $region41: #{graphsage1_forward.3} parent=35 // pred_check
        %p616 = pneg %p299
      $region42: #{graphsage1_forward.3} parent=35 // pred_check_branch
        %618 = sbr.rel (%p616) target = $region44
      $region43: #{graphsage1_forward.3} parent=35 // pred_region
        %v619 = vld [vmem:[#allocation2] sm:$0xff]
        %v620 = vld [vmem:[#allocation2 + $0x8] sm:$0xff]
        %v621 = vld [vmem:[#allocation2 + $0x10] sm:$0xff]
        %v622 = vld [vmem:[#allocation2 + $0x18] sm:$0xff]
        %v623 = vld [vmem:[#allocation2 + $0x20] sm:$0xff]
        %v624 = vld [vmem:[#allocation2 + $0x28] sm:$0xff]
        %v625 = vld [vmem:[#allocation2 + $0x30] sm:$0xff]
        %v626 = vld [vmem:[#allocation2 + $0x38] sm:$0xff]
        %v627 = vld [vmem:[#allocation2 + $0x40] sm:$0xff]
        %v628 = vld [vmem:[#allocation2 + $0x48] sm:$0xff]
        %v629 = vld [vmem:[#allocation2 + $0x50] sm:$0xff]
        %v630 = vld [vmem:[#allocation2 + $0x58] sm:$0xff]
        %v631 = vld [vmem:[#allocation2 + $0x60] sm:$0xff]
        %v632 = vld [vmem:[#allocation2 + $0x68] sm:$0xff]
        %v633 = vld [vmem:[#allocation2 + $0x70] sm:$0xff]
        %v634 = vld [vmem:[#allocation2 + $0x78] sm:$0xff]
        %v635 = vld [vmem:[%s290] sm:$0xff]
        %v636 = vld [vmem:[%s290 + $0x8] sm:$0xff]
        %v637 = vld [vmem:[%s290 + $0x10] sm:$0xff]
        %v638 = vld [vmem:[%s290 + $0x18] sm:$0xff]
        %v639 = vld [vmem:[%s290 + $0x20] sm:$0xff]
        %v640 = vld [vmem:[%s290 + $0x28] sm:$0xff]
        %v641 = vld [vmem:[%s290 + $0x30] sm:$0xff]
        %v642 = vld [vmem:[%s290 + $0x38] sm:$0xff]
        %v643 = vld [vmem:[%s290 + $0x40] sm:$0xff]
        %v644 = vld [vmem:[%s290 + $0x48] sm:$0xff]
        %v645 = vld [vmem:[%s290 + $0x50] sm:$0xff]
        %v646 = vld [vmem:[%s290 + $0x58] sm:$0xff]
        %v647 = vld [vmem:[%s290 + $0x60] sm:$0xff]
        %v648 = vld [vmem:[%s290 + $0x68] sm:$0xff]
        %v649 = vld [vmem:[%s290 + $0x70] sm:$0xff]
        %v650 = vld [vmem:[%s290 + $0x78] sm:$0xff]
        %652 = vset.pattern.permute.xlu0 0
        %653 = vperm.xlu0 %652, %v635
        %v654 = vpop.permute.xlu0 %653
        %657 = vset.pattern.permute.xlu0 0
        %658 = vperm.xlu0 %657, %v636
        %v659 = vpop.permute.xlu0 %658
        %662 = vset.pattern.permute.xlu0 0
        %663 = vperm.xlu0 %662, %v637
        %v664 = vpop.permute.xlu0 %663
        %667 = vset.pattern.permute.xlu0 0
        %668 = vperm.xlu0 %667, %v638
        %v669 = vpop.permute.xlu0 %668
        %672 = vset.pattern.permute.xlu0 0
        %673 = vperm.xlu0 %672, %v639
        %v674 = vpop.permute.xlu0 %673
        %677 = vset.pattern.permute.xlu0 0
        %678 = vperm.xlu0 %677, %v640
        %v679 = vpop.permute.xlu0 %678
        %682 = vset.pattern.permute.xlu0 0
        %683 = vperm.xlu0 %682, %v641
        %v684 = vpop.permute.xlu0 %683
        %687 = vset.pattern.permute.xlu0 0
        %688 = vperm.xlu0 %687, %v642
        %v689 = vpop.permute.xlu0 %688
        %692 = vset.pattern.permute.xlu0 0
        %693 = vperm.xlu0 %692, %v643
        %v694 = vpop.permute.xlu0 %693
        %697 = vset.pattern.permute.xlu0 0
        %698 = vperm.xlu0 %697, %v644
        %v699 = vpop.permute.xlu0 %698
        %702 = vset.pattern.permute.xlu0 0
        %703 = vperm.xlu0 %702, %v645
        %v704 = vpop.permute.xlu0 %703
        %707 = vset.pattern.permute.xlu0 0
        %708 = vperm.xlu0 %707, %v646
        %v709 = vpop.permute.xlu0 %708
        %712 = vset.pattern.permute.xlu0 0
        %713 = vperm.xlu0 %712, %v647
        %v714 = vpop.permute.xlu0 %713
        %717 = vset.pattern.permute.xlu0 0
        %718 = vperm.xlu0 %717, %v648
        %v719 = vpop.permute.xlu0 %718
        %722 = vset.pattern.permute.xlu0 0
        %723 = vperm.xlu0 %722, %v649
        %v724 = vpop.permute.xlu0 %723
        %727 = vset.pattern.permute.xlu0 0
        %728 = vperm.xlu0 %727, %v650
        %v729 = vpop.permute.xlu0 %728
        %v731 = vmul.f32 %v619, %v654
        %v732 = vmul.f32 %v620, %v659
        %v733 = vmul.f32 %v621, %v664
        %v734 = vmul.f32 %v622, %v669
        %v735 = vmul.f32 %v623, %v674
        %v736 = vmul.f32 %v624, %v679
        %v737 = vmul.f32 %v625, %v684
        %v738 = vmul.f32 %v626, %v689
        %v739 = vmul.f32 %v627, %v694
        %v740 = vmul.f32 %v628, %v699
        %v741 = vmul.f32 %v629, %v704
        %v742 = vmul.f32 %v630, %v709
        %v743 = vmul.f32 %v631, %v714
        %v744 = vmul.f32 %v632, %v719
        %v745 = vmul.f32 %v633, %v724
        %v746 = vmul.f32 %v634, %v729
        %v747 = vld [vmem:[%s284] sm:$0xff]
        %v748 = vld [vmem:[%s284 + $0x8] sm:$0xff]
        %v749 = vld [vmem:[%s284 + $0x10] sm:$0xff]
        %v750 = vld [vmem:[%s284 + $0x18] sm:$0xff]
        %v751 = vld [vmem:[%s284 + $0x20] sm:$0xff]
        %v752 = vld [vmem:[%s284 + $0x28] sm:$0xff]
        %v753 = vld [vmem:[%s284 + $0x30] sm:$0xff]
        %v754 = vld [vmem:[%s284 + $0x38] sm:$0xff]
        %v755 = vld [vmem:[%s284 + $0x40] sm:$0xff]
        %v756 = vld [vmem:[%s284 + $0x48] sm:$0xff]
        %v757 = vld [vmem:[%s284 + $0x50] sm:$0xff]
        %v758 = vld [vmem:[%s284 + $0x58] sm:$0xff]
        %v759 = vld [vmem:[%s284 + $0x60] sm:$0xff]
        %v760 = vld [vmem:[%s284 + $0x68] sm:$0xff]
        %v761 = vld [vmem:[%s284 + $0x70] sm:$0xff]
        %v762 = vld [vmem:[%s284 + $0x78] sm:$0xff]
        %v763 = vadd.f32 %v731, %v747
        %v764 = vadd.f32 %v732, %v748
        %v765 = vadd.f32 %v733, %v749
        %v766 = vadd.f32 %v734, %v750
        %v767 = vadd.f32 %v735, %v751
        %v768 = vadd.f32 %v736, %v752
        %v769 = vadd.f32 %v737, %v753
        %v770 = vadd.f32 %v738, %v754
        %v771 = vadd.f32 %v739, %v755
        %v772 = vadd.f32 %v740, %v756
        %v773 = vadd.f32 %v741, %v757
        %v774 = vadd.f32 %v742, %v758
        %v775 = vadd.f32 %v743, %v759
        %v776 = vadd.f32 %v744, %v760
        %v777 = vadd.f32 %v745, %v761
        %v778 = vadd.f32 %v746, %v762
        %v779 = vmax.f32 %v763, 0.0
        %v780 = vmax.f32 %v764, 0.0
        %v781 = vmax.f32 %v765, 0.0
        %v782 = vmax.f32 %v766, 0.0
        %v783 = vmax.f32 %v767, 0.0
        %v784 = vmax.f32 %v768, 0.0
        %v785 = vmax.f32 %v769, 0.0
        %v786 = vmax.f32 %v770, 0.0
        %v787 = vmax.f32 %v771, 0.0
        %v788 = vmax.f32 %v772, 0.0
        %v789 = vmax.f32 %v773, 0.0
        %v790 = vmax.f32 %v774, 0.0
        %v791 = vmax.f32 %v775, 0.0
        %v792 = vmax.f32 %v776, 0.0
        %v793 = vmax.f32 %v777, 0.0
        %v794 = vmax.f32 %v778, 0.0
        %795 = vst [vmem:[%s296] sm:$0xff] %v779
        %796 = vst [vmem:[%s296 + $0x8] sm:$0xff] %v780
        %797 = vst [vmem:[%s296 + $0x10] sm:$0xff] %v781
        %798 = vst [vmem:[%s296 + $0x18] sm:$0xff] %v782
        %799 = vst [vmem:[%s296 + $0x20] sm:$0xff] %v783
        %800 = vst [vmem:[%s296 + $0x28] sm:$0xff] %v784
        %801 = vst [vmem:[%s296 + $0x30] sm:$0xff] %v785
        %802 = vst [vmem:[%s296 + $0x38] sm:$0xff] %v786
        %803 = vst [vmem:[%s296 + $0x40] sm:$0xff] %v787
        %804 = vst [vmem:[%s296 + $0x48] sm:$0xff] %v788
        %805 = vst [vmem:[%s296 + $0x50] sm:$0xff] %v789
        %806 = vst [vmem:[%s296 + $0x58] sm:$0xff] %v790
        %807 = vst [vmem:[%s296 + $0x60] sm:$0xff] %v791
        %808 = vst [vmem:[%s296 + $0x68] sm:$0xff] %v792
        %809 = vst [vmem:[%s296 + $0x70] sm:$0xff] %v793
        %810 = vst [vmem:[%s296 + $0x78] sm:$0xff] %v794
      $region44: #{graphsage1_forward.3} parent=35 // pred_fallthru
        _
      %s811 = smul.u32 16, %s19
      %p812 = scmp.lt.s32.totalorder %s811, 31
      %s813 = scalar_select %p812, %s811, 31
      %s814 = smul.addr %s813, 8
      %s815 = scalar_lea.vmem %s4, %s814
      // Predicated region
      $region45: #{graphsage1_forward.3} parent=35 // pred_check
        %p816 = pneg %p151
      $region46: #{graphsage1_forward.3} parent=35 // pred_check_branch
        %818 = sbr.rel (%p816) target = $region48
      $region47: #{graphsage1_forward.3} parent=35 // pred_region
        %s819 = smul.u32 16, %s19
      $region48: #{graphsage1_forward.3} parent=35 // pred_fallthru
        _
    $region36: #{graphsage1_forward.3} parent=5 // pred_fallthru
      _
    %p820 = scmp.le.s32.totalorder 2, %s10
    // Predicated region
    $region49: #{graphsage1_forward.3} parent=5 // pred_check
      %p821 = pneg %p820
    $region50: #{graphsage1_forward.3} parent=5 // pred_check_branch
      %823 = sbr.rel (%p821) target = $region52
    $region51: #{graphsage1_forward.3} parent=5 // pred_region
      %s824 = ssub.s32 %s10, 2
      // Predicated region
      $region53: #{graphsage1_forward.3} parent=51 // pred_check
        %p825 = pneg %p157
      $region54: #{graphsage1_forward.3} parent=51 // pred_check_branch
        %827 = sbr.rel (%p825) target = $region56
      $region55: #{graphsage1_forward.3} parent=51 // pred_region
        %s828 = smul.u32 16, %s21
        %p829 = scmp.lt.s32.totalorder %s828, 31
        %s830 = scalar_select %p829, %s828, 31
        %s831 = smul.addr %s830, 8
        %s832 = scalar_lea.vmem %s4, %s831
      $region56: #{graphsage1_forward.3} parent=51 // pred_fallthru
        _
    $region52: #{graphsage1_forward.3} parent=5 // pred_fallthru
      _
  $region6: #{graphsage1_forward.3} parent=0 // loop_footer
    %s14 = sadd.s32 1, %s10
  $region7: #{graphsage1_forward.3} parent=0 // loop_footer_branch
    %9 = sbr.rel target = $region3
  $region8: #{graphsage1_forward.3} parent=0 // loop_exit
    _

</llo_original>
